<compile_context>
chip_gen: v6e
topology: v6e:2x2x1
jax: 0.10.0
libtpu: 0.0.40
codegen_flags: <defaults>
</compile_context>

<pallas_src>
import functools

import numpy as np
import jax
import jax.numpy as jnp
from jax.experimental import pallas as pl
from jax.experimental.pallas import tpu as pltpu

_LANE = 128
_SUBLANE = 8


def _round_up(n, m):
    return ((n + m - 1) // m) * m


def _cdiv(a, b):
    return (a + b - 1) // b


# ----------------------------------------------------------------------------
# Pallas kernel: both Q heads for one batch tile.
# ----------------------------------------------------------------------------
def critic_kernel(x_ref, a_ref,
                  w1x_ref, w1a_ref, b1_ref,
                  w2_1_ref, b2_1_ref, w2_2_ref, b2_2_ref,
                  w3_ref, b3_ref,
                  out_ref, *, hp):
    wdt = w1x_ref.dtype                               # bf16 (fast) or f32
    x = x_ref[...].astype(wdt)                        # (TB, obs_dim)
    a = a_ref[...].astype(wdt)                        # (TB, act_dim)

    # Layer 1 (both heads fused along lanes): equivalent to [x, a] @ W1_cat.
    h1 = (jnp.dot(x, w1x_ref[...], preferred_element_type=jnp.float32)
          + jnp.dot(a, w1a_ref[...], preferred_element_type=jnp.float32)
          + b1_ref[...])                              # (TB, 2*Hp) f32
    h1 = jnp.maximum(h1, 0.0)

    # Layer 2: per-head (static lane slices at 128-multiple boundaries).
    # TODO(synk): for very large hidden_dim / batch tiles, process one head at
    # a time here to cut peak live activation VMEM (~25%).
    h1_q1 = h1[:, :hp].astype(wdt)
    h1_q2 = h1[:, hp:].astype(wdt)
    h2_q1 = jnp.maximum(
        jnp.dot(h1_q1, w2_1_ref[...], preferred_element_type=jnp.float32)
        + b2_1_ref[...], 0.0)                         # (TB, Hp) f32
    h2_q2 = jnp.maximum(
        jnp.dot(h1_q2, w2_2_ref[...], preferred_element_type=jnp.float32)
        + b2_2_ref[...], 0.0)                         # (TB, Hp) f32

    # Layer 3: single fused matmul (lane-concat at a 128-aligned boundary),
    # lane-dense (TB, 2) store: col 0 = Q1, col 1 = Q2.
    h2 = jnp.concatenate([h2_q1, h2_q2], axis=-1).astype(wdt)   # (TB, 2*Hp)
    out_ref[...] = (jnp.dot(h2, w3_ref[...], preferred_element_type=jnp.float32)
                    + b3_ref[...])                    # (TB, 2)


# ----------------------------------------------------------------------------
# Parameter construction (mirrors weight_init: orthogonal W, zero bias).
# Weights stored transposed, i.e. (in_features, out_features): y = x @ W + b.
# ----------------------------------------------------------------------------
def _orthogonal(key, out_dim, in_dim):
    n = max(out_dim, in_dim)
    a = jax.random.normal(key, (n, n), jnp.float32)
    q, r = jnp.linalg.qr(a)
    q = q * jnp.sign(jnp.diagonal(r))[None, :]
    return q[:out_dim, :in_dim]


def make_qfunction_params(key, obs_dim, action_dim, hidden_dim):
    d_in = obs_dim + action_dim
    k1, k2, k3 = jax.random.split(key, 3)
    w1 = _orthogonal(k1, hidden_dim, d_in).T            # (d_in, hidden)
    w2 = _orthogonal(k2, hidden_dim, hidden_dim).T      # (hidden, hidden)
    w3 = _orthogonal(k3, 1, hidden_dim).T               # (hidden, 1)
    b1 = jnp.zeros((1, hidden_dim), jnp.float32)
    b2 = jnp.zeros((1, hidden_dim), jnp.float32)
    b3 = jnp.zeros((1, 1), jnp.float32)
    return (w1, b1, w2, b2, w3, b3)


def fuse_critic_params(q1_params, q2_params, obs_dim, action_dim, hidden_dim,
                       weight_dtype=jnp.bfloat16):
    """Lane-padded, head-fused parameters (built once, outside the hot path).

    Weights are cast to `weight_dtype` (bf16 by default) for MXU speed;
    biases stay f32 (added after the f32-accumulated matmul).
    """
    hp = _round_up(hidden_dim, _LANE)

    def pad2(w, rows, cols):
        return jnp.pad(w, ((0, rows - w.shape[0]), (0, cols - w.shape[1])))

    q1_w1, q1_b1, q1_w2, q1_b2, q1_w3, q1_b3 = q1_params
    q2_w1, q2_b1, q2_w2, q2_b2, q2_w3, q2_b3 = q2_params

    # Layer 1: split rows into obs/action parts, concat heads along lanes.
    w1x = jnp.concatenate([pad2(q1_w1[:obs_dim], obs_dim, hp),
                           pad2(q2_w1[:obs_dim], obs_dim, hp)], axis=1)
    w1a = jnp.concatenate([pad2(q1_w1[obs_dim:], action_dim, hp),
                           pad2(q2_w1[obs_dim:], action_dim, hp)], axis=1)
    b1 = jnp.concatenate([pad2(q1_b1, 1, hp), pad2(q2_b1, 1, hp)], axis=1)

    # Layer 2: per-head, zero-padded to (Hp, Hp).
    w2_1 = pad2(q1_w2, hp, hp)
    b2_1 = pad2(q1_b2, 1, hp)
    w2_2 = pad2(q2_w2, hp, hp)
    b2_2 = pad2(q2_b2, 1, hp)

    # Layer 3 fused: rows [0, hidden) feed output col 0 (Q1),
    # rows [hp, hp+hidden) feed output col 1 (Q2).
    w3 = jnp.zeros((2 * hp, 2), jnp.float32)
    w3 = w3.at[:hidden_dim, 0:1].set(q1_w3)
    w3 = w3.at[hp:hp + hidden_dim, 1:2].set(q2_w3)
    b3 = jnp.concatenate([q1_b3, q2_b3], axis=1)         # (1, 2)

    wd = weight_dtype
    return (w1x.astype(wd), w1a.astype(wd), b1.astype(jnp.float32),
            w2_1.astype(wd), b2_1.astype(jnp.float32),
            w2_2.astype(wd), b2_2.astype(jnp.float32),
            w3.astype(wd), b3.astype(jnp.float32))


# ----------------------------------------------------------------------------
# VMEM sizing from actual buffers (weights x bufs + 2x batch tiles + temps).
# ----------------------------------------------------------------------------
def _vmem_limit_bytes(fused_params, tb, obs_dim, act_dim, hp, weight_bufs):
    weight_bytes = sum(int(np.prod(p.shape)) * p.dtype.itemsize
                       for p in fused_params) * weight_bufs
    io_bytes = 2 * tb * (obs_dim + act_dim + 2) * 4        # double-buffered I/O tiles
    act_bytes = 8 * tb * hp * 4                            # h1/h2 (+ bf16 copies), generous
    estimate = int((weight_bytes + io_bytes + act_bytes) * 1.5) + (2 << 20)
    try:
        cap = int(pltpu.get_tpu_info().vmem_capacity_bytes * 3 // 4)
    except Exception:
        cap = 48 * 1024 * 1024                             # safe under v7x's 64 MiB / TC
    cap = max(cap, 32 * 1024 * 1024)
    return min(max(estimate, 32 * 1024 * 1024), cap)


# ----------------------------------------------------------------------------
# Wrapper
# ----------------------------------------------------------------------------
def critic_forward(x, action, fused_params, detach_encoder=False, block_b=512):
    """x: (B, obs_dim) encoder features; action: (B, act_dim).

    Returns (q1, q2), each (B, 1), matching the PyTorch Critic forward.
    """
    # TODO(synk): the reference Critic wraps an externally-supplied conv
    # encoder not defined in this module; the encoder here is the identity.
    feats = x
    if detach_encoder:
        feats = jax.lax.stop_gradient(feats)
    assert feats.shape[0] == action.shape[0]

    B, obs_dim = feats.shape
    act_dim = action.shape[1]
    hp = fused_params[3].shape[0]                          # w2_1 is (Hp, Hp)

    feats = feats.astype(jnp.float32)
    action = action.astype(jnp.float32)

    # Batch tiling: minimize padding waste; give v7x's two TensorCores at
    # least two "parallel" grid steps when the batch is large enough.
    n_tiles = _cdiv(B, block_b)
    if B >= 2 * _SUBLANE:
        n_tiles = max(n_tiles, 2)
    tb = _round_up(_cdiv(B, n_tiles), _SUBLANE)
    b_pad = n_tiles * tb
    if b_pad != B:
        feats = jnp.pad(feats, ((0, b_pad - B), (0, 0)))
        action = jnp.pad(action, ((0, b_pad - B), (0, 0)))

    grid = (n_tiles,)

    def batch_spec(cols):
        return pl.BlockSpec((tb, cols), lambda i: (i, 0))

    def const_spec(shape, single_buffer):
        if single_buffer:
            # Grid-invariant weights: single-buffer to halve resident VMEM.
            return pl.BlockSpec(shape, lambda i: (0, 0),
                                pipeline_mode=pl.Buffered(1))
        return pl.BlockSpec(shape, lambda i: (0, 0))

    out = None
    err = None
    for single_buffer in (True, False):
        in_specs = ([batch_spec(obs_dim), batch_spec(act_dim)]
                    + [const_spec(p.shape, single_buffer) for p in fused_params])
        out_spec = pl.BlockSpec((tb, 2), lambda i: (i, 0))
        vmem_limit = _vmem_limit_bytes(fused_params, tb, obs_dim, act_dim, hp,
                                       weight_bufs=1 if single_buffer else 2)
        try:
            out = pl.pallas_call(
                functools.partial(critic_kernel, hp=hp),
                out_shape=jax.ShapeDtypeStruct((b_pad, 2), jnp.float32),
                grid=grid,
                in_specs=in_specs,
                out_specs=out_spec,
                compiler_params=pltpu.CompilerParams(
                    dimension_semantics=("parallel",),
                    vmem_limit_bytes=vmem_limit,
                ),
            )(feats, action, *fused_params)
            break
        except Exception as e:     # fallback if Buffered(1) is rejected
            err = e
            out = None
    if out is None:
        raise err

    out = out[:B]
    return out[:, 0:1], out[:, 1:2]


# ----------------------------------------------------------------------------
# Pure-JAX reference for verification.
# ----------------------------------------------------------------------------
def _q_ref(xa, params):
    w1, b1, w2, b2, w3, b3 = params
    h = jnp.maximum(xa @ w1 + b1, 0.0)
    h = jnp.maximum(h @ w2 + b2, 0.0)
    return h @ w3 + b3


if __name__ == "__main__":
    # Small shapes consistent with the module.
    B, OBS_DIM, ACT_DIM, HIDDEN = 8, 32, 4, 32

    key = jax.random.PRNGKey(0)
    kx, ka, kq1, kq2 = jax.random.split(key, 4)

    x = jax.random.normal(kx, (B, OBS_DIM), jnp.float32)       # encoder features
    action = jax.random.normal(ka, (B, ACT_DIM), jnp.float32)

    q1_params = make_qfunction_params(kq1, OBS_DIM, ACT_DIM, HIDDEN)
    q2_params = make_qfunction_params(kq2, OBS_DIM, ACT_DIM, HIDDEN)

    xa = jnp.concatenate([x, action], axis=1)
    ref_q1 = _q_ref(xa, q1_params)
    ref_q2 = _q_ref(xa, q2_params)

    # Fast (default) bf16-MXU path: verify loosely against the f32 reference.
    fused_bf16 = fuse_critic_params(q1_params, q2_params, OBS_DIM, ACT_DIM,
                                    HIDDEN, weight_dtype=jnp.bfloat16)
    q1, q2 = critic_forward(x, action, fused_bf16)
    jax.block_until_ready((q1, q2))
    np.testing.assert_allclose(np.asarray(q1), np.asarray(ref_q1),
                               rtol=1e-1, atol=1e-1)
    np.testing.assert_allclose(np.asarray(q2), np.asarray(ref_q2),
                               rtol=1e-1, atol=1e-1)

    # f32 path: tight plumbing check against the reference.
    fused_f32 = fuse_critic_params(q1_params, q2_params, OBS_DIM, ACT_DIM,
                                   HIDDEN, weight_dtype=jnp.float32)
    q1f, q2f = critic_forward(x, action, fused_f32)
    jax.block_until_ready((q1f, q2f))
    np.testing.assert_allclose(np.asarray(q1f), np.asarray(ref_q1),
                               rtol=1e-5, atol=1e-5)
    np.testing.assert_allclose(np.asarray(q2f), np.asarray(ref_q2),
                               rtol=1e-5, atol=1e-5)

    print("KERNEL_OK")
</pallas_src>

<mosaic_0001>
module attributes {stable_mosaic.version = 11 : i64} {
  func.func @critic_kernel(%arg0: i32, %arg1: memref<8x32xf32, #tpu.memory_space<vmem>>, %arg2: memref<8x4xf32, #tpu.memory_space<vmem>>, %arg3: memref<32x256xbf16, #tpu.memory_space<vmem>>, %arg4: memref<4x256xbf16, #tpu.memory_space<vmem>>, %arg5: memref<1x256xf32, #tpu.memory_space<vmem>>, %arg6: memref<128x128xbf16, #tpu.memory_space<vmem>>, %arg7: memref<1x128xf32, #tpu.memory_space<vmem>>, %arg8: memref<128x128xbf16, #tpu.memory_space<vmem>>, %arg9: memref<1x128xf32, #tpu.memory_space<vmem>>, %arg10: memref<256x2xbf16, #tpu.memory_space<vmem>>, %arg11: memref<1x2xf32, #tpu.memory_space<vmem>>, %arg12: memref<8x2xf32, #tpu.memory_space<vmem>>) attributes {dimension_semantics = [#tpu.dimension_semantics<parallel>], iteration_bounds = array<i64: 1>, scalar_prefetch = 0 : i64, scratch_operands = 0 : i64, tpu.core_type = #tpu.core_type<tc>, window_params = [{transform_indices = @transform_0, window_bounds = array<i64: 8, 32>}, {transform_indices = @transform_1, window_bounds = array<i64: 8, 4>}, {pipeline_mode = #tpu.pipeline_mode<synchronous>, transform_indices = @transform_2, window_bounds = array<i64: 32, 256>}, {pipeline_mode = #tpu.pipeline_mode<synchronous>, transform_indices = @transform_3, window_bounds = array<i64: 4, 256>}, {pipeline_mode = #tpu.pipeline_mode<synchronous>, transform_indices = @transform_4, window_bounds = array<i64: 1, 256>}, {pipeline_mode = #tpu.pipeline_mode<synchronous>, transform_indices = @transform_5, window_bounds = array<i64: 128, 128>}, {pipeline_mode = #tpu.pipeline_mode<synchronous>, transform_indices = @transform_6, window_bounds = array<i64: 1, 128>}, {pipeline_mode = #tpu.pipeline_mode<synchronous>, transform_indices = @transform_7, window_bounds = array<i64: 128, 128>}, {pipeline_mode = #tpu.pipeline_mode<synchronous>, transform_indices = @transform_8, window_bounds = array<i64: 1, 128>}, {pipeline_mode = #tpu.pipeline_mode<synchronous>, transform_indices = @transform_9, window_bounds = array<i64: 256, 2>}, {pipeline_mode = #tpu.pipeline_mode<synchronous>, transform_indices = @transform_10, window_bounds = array<i64: 1, 2>}, {transform_indices = @transform_11, window_bounds = array<i64: 8, 2>}]} {
    %c0 = arith.constant 0 : index
    %c0_0 = arith.constant 0 : index
    %0 = vector.load %arg1[%c0, %c0_0] : memref<8x32xf32, #tpu.memory_space<vmem>>, vector<8x32xf32>
    %1 = arith.truncf %0 : vector<8x32xf32> to vector<8x32xbf16>
    %c0_1 = arith.constant 0 : index
    %c0_2 = arith.constant 0 : index
    %2 = vector.load %arg2[%c0_1, %c0_2] : memref<8x4xf32, #tpu.memory_space<vmem>>, vector<8x4xf32>
    %3 = arith.truncf %2 : vector<8x4xf32> to vector<8x4xbf16>
    %c0_3 = arith.constant 0 : index
    %c0_4 = arith.constant 0 : index
    %4 = vector.load %arg3[%c0_3, %c0_4] : memref<32x256xbf16, #tpu.memory_space<vmem>>, vector<32x256xbf16>
    %cst = arith.constant dense<0.000000e+00> : vector<8x256xf32>
    %5 = tpu.matmul %1, %4, %cst {dimension_numbers = #tpu.dot_dimension_numbers<[1], [0], [0], [1], [0, 0, 1, 1], [], []>} : vector<8x32xbf16>, vector<32x256xbf16>, vector<8x256xf32> -> vector<8x256xf32>
    %c0_5 = arith.constant 0 : index
    %c0_6 = arith.constant 0 : index
    %6 = vector.load %arg4[%c0_5, %c0_6] : memref<4x256xbf16, #tpu.memory_space<vmem>>, vector<4x256xbf16>
    %cst_7 = arith.constant dense<0.000000e+00> : vector<8x256xf32>
    %7 = tpu.matmul %3, %6, %cst_7 {dimension_numbers = #tpu.dot_dimension_numbers<[1], [0], [0], [1], [0, 0, 1, 1], [], []>} : vector<8x4xbf16>, vector<4x256xbf16>, vector<8x256xf32> -> vector<8x256xf32>
    %8 = arith.addf %5, %7 : vector<8x256xf32>
    %c0_8 = arith.constant 0 : index
    %c0_9 = arith.constant 0 : index
    %9 = vector.load %arg5[%c0_8, %c0_9] : memref<1x256xf32, #tpu.memory_space<vmem>>, vector<1x256xf32>
    %10 = vector.broadcast %9 : vector<1x256xf32> to vector<8x256xf32>
    %11 = arith.addf %8, %10 : vector<8x256xf32>
    %cst_10 = arith.constant 0.000000e+00 : f32
    %12 = vector.broadcast %cst_10 : f32 to vector<8x256xf32>
    %13 = arith.maximumf %11, %12 : vector<8x256xf32>
    %14 = vector.extract_strided_slice %13 {offsets = [0, 0], sizes = [8, 128], strides = [1, 1]} : vector<8x256xf32> to vector<8x128xf32>
    %15 = arith.truncf %14 : vector<8x128xf32> to vector<8x128xbf16>
    %16 = vector.extract_strided_slice %13 {offsets = [0, 128], sizes = [8, 128], strides = [1, 1]} : vector<8x256xf32> to vector<8x128xf32>
    %17 = arith.truncf %16 : vector<8x128xf32> to vector<8x128xbf16>
    %c0_11 = arith.constant 0 : index
    %c0_12 = arith.constant 0 : index
    %18 = vector.load %arg6[%c0_11, %c0_12] : memref<128x128xbf16, #tpu.memory_space<vmem>>, vector<128x128xbf16>
    %cst_13 = arith.constant dense<0.000000e+00> : vector<8x128xf32>
    %19 = tpu.matmul %15, %18, %cst_13 {dimension_numbers = #tpu.dot_dimension_numbers<[1], [0], [0], [1], [0, 0, 1, 1], [], []>} : vector<8x128xbf16>, vector<128x128xbf16>, vector<8x128xf32> -> vector<8x128xf32>
    %c0_14 = arith.constant 0 : index
    %c0_15 = arith.constant 0 : index
    %20 = vector.load %arg7[%c0_14, %c0_15] : memref<1x128xf32, #tpu.memory_space<vmem>>, vector<1x128xf32>
    %21 = vector.broadcast %20 : vector<1x128xf32> to vector<8x128xf32>
    %22 = arith.addf %19, %21 : vector<8x128xf32>
    %cst_16 = arith.constant 0.000000e+00 : f32
    %23 = vector.broadcast %cst_16 : f32 to vector<8x128xf32>
    %24 = arith.maximumf %22, %23 : vector<8x128xf32>
    %c0_17 = arith.constant 0 : index
    %c0_18 = arith.constant 0 : index
    %25 = vector.load %arg8[%c0_17, %c0_18] : memref<128x128xbf16, #tpu.memory_space<vmem>>, vector<128x128xbf16>
    %cst_19 = arith.constant dense<0.000000e+00> : vector<8x128xf32>
    %26 = tpu.matmul %17, %25, %cst_19 {dimension_numbers = #tpu.dot_dimension_numbers<[1], [0], [0], [1], [0, 0, 1, 1], [], []>} : vector<8x128xbf16>, vector<128x128xbf16>, vector<8x128xf32> -> vector<8x128xf32>
    %c0_20 = arith.constant 0 : index
    %c0_21 = arith.constant 0 : index
    %27 = vector.load %arg9[%c0_20, %c0_21] : memref<1x128xf32, #tpu.memory_space<vmem>>, vector<1x128xf32>
    %28 = vector.broadcast %27 : vector<1x128xf32> to vector<8x128xf32>
    %29 = arith.addf %26, %28 : vector<8x128xf32>
    %cst_22 = arith.constant 0.000000e+00 : f32
    %30 = vector.broadcast %cst_22 : f32 to vector<8x128xf32>
    %31 = arith.maximumf %29, %30 : vector<8x128xf32>
    %32 = tpu.concatenate %24, %31 in 1 : vector<8x128xf32>, vector<8x128xf32> -> vector<8x256xf32>
    %33 = arith.truncf %32 : vector<8x256xf32> to vector<8x256xbf16>
    %c0_23 = arith.constant 0 : index
    %c0_24 = arith.constant 0 : index
    %34 = vector.load %arg10[%c0_23, %c0_24] : memref<256x2xbf16, #tpu.memory_space<vmem>>, vector<256x2xbf16>
    %cst_25 = arith.constant dense<0.000000e+00> : vector<8x2xf32>
    %35 = tpu.matmul %33, %34, %cst_25 {dimension_numbers = #tpu.dot_dimension_numbers<[1], [0], [0], [1], [0, 0, 1, 1], [], []>} : vector<8x256xbf16>, vector<256x2xbf16>, vector<8x2xf32> -> vector<8x2xf32>
    %c0_26 = arith.constant 0 : index
    %c0_27 = arith.constant 0 : index
    %36 = vector.load %arg11[%c0_26, %c0_27] : memref<1x2xf32, #tpu.memory_space<vmem>>, vector<1x2xf32>
    %37 = vector.broadcast %36 : vector<1x2xf32> to vector<8x2xf32>
    %38 = arith.addf %35, %37 : vector<8x2xf32>
    %c0_28 = arith.constant 0 : index
    %c0_29 = arith.constant 0 : index
    %39 = vector.load %arg12[%c0_28, %c0_29] : memref<8x2xf32, #tpu.memory_space<vmem>>, vector<8x2xf32>
    tpu.vector_store %arg12[%c0_28, %c0_29], %38 {strides = array<i32>} : memref<8x2xf32, #tpu.memory_space<vmem>>, vector<8x2xf32>,
    return
  }
  func.func @transform_0(%arg0: i32) -> (i32, i32) {
    %c0_i32 = arith.constant 0 : i32
    %c0_i32_0 = arith.constant 0 : i32
    return %arg0, %c0_i32 : i32, i32
  }
  func.func @transform_1(%arg0: i32) -> (i32, i32) {
    %c0_i32 = arith.constant 0 : i32
    %c0_i32_0 = arith.constant 0 : i32
    return %arg0, %c0_i32 : i32, i32
  }
  func.func @transform_2(%arg0: i32) -> (i32, i32) {
    %c0_i32 = arith.constant 0 : i32
    %c0_i32_0 = arith.constant 0 : i32
    %c0_i32_1 = arith.constant 0 : i32
    return %c0_i32, %c0_i32_0 : i32, i32
  }
  func.func @transform_3(%arg0: i32) -> (i32, i32) {
    %c0_i32 = arith.constant 0 : i32
    %c0_i32_0 = arith.constant 0 : i32
    %c0_i32_1 = arith.constant 0 : i32
    return %c0_i32, %c0_i32_0 : i32, i32
  }
  func.func @transform_4(%arg0: i32) -> (i32, i32) {
    %c0_i32 = arith.constant 0 : i32
    %c0_i32_0 = arith.constant 0 : i32
    %c0_i32_1 = arith.constant 0 : i32
    return %c0_i32, %c0_i32_0 : i32, i32
  }
  func.func @transform_5(%arg0: i32) -> (i32, i32) {
    %c0_i32 = arith.constant 0 : i32
    %c0_i32_0 = arith.constant 0 : i32
    %c0_i32_1 = arith.constant 0 : i32
    return %c0_i32, %c0_i32_0 : i32, i32
  }
  func.func @transform_6(%arg0: i32) -> (i32, i32) {
    %c0_i32 = arith.constant 0 : i32
    %c0_i32_0 = arith.constant 0 : i32
    %c0_i32_1 = arith.constant 0 : i32
    return %c0_i32, %c0_i32_0 : i32, i32
  }
  func.func @transform_7(%arg0: i32) -> (i32, i32) {
    %c0_i32 = arith.constant 0 : i32
    %c0_i32_0 = arith.constant 0 : i32
    %c0_i32_1 = arith.constant 0 : i32
    return %c0_i32, %c0_i32_0 : i32, i32
  }
  func.func @transform_8(%arg0: i32) -> (i32, i32) {
    %c0_i32 = arith.constant 0 : i32
    %c0_i32_0 = arith.constant 0 : i32
    %c0_i32_1 = arith.constant 0 : i32
    return %c0_i32, %c0_i32_0 : i32, i32
  }
  func.func @transform_9(%arg0: i32) -> (i32, i32) {
    %c0_i32 = arith.constant 0 : i32
    %c0_i32_0 = arith.constant 0 : i32
    %c0_i32_1 = arith.constant 0 : i32
    return %c0_i32, %c0_i32_0 : i32, i32
  }
  func.func @transform_10(%arg0: i32) -> (i32, i32) {
    %c0_i32 = arith.constant 0 : i32
    %c0_i32_0 = arith.constant 0 : i32
    %c0_i32_1 = arith.constant 0 : i32
    return %c0_i32, %c0_i32_0 : i32, i32
  }
  func.func @transform_11(%arg0: i32) -> (i32, i32) {
    %c0_i32 = arith.constant 0 : i32
    %c0_i32_0 = arith.constant 0 : i32
    return %arg0, %c0_i32 : i32, i32
  }
}

module attributes {stable_mosaic.version = 11 : i64} {
  func.func @critic_kernel(%arg0: i32, %arg1: memref<8x32xf32, #tpu.memory_space<vmem>>, %arg2: memref<8x4xf32, #tpu.memory_space<vmem>>, %arg3: memref<32x256xbf16, #tpu.memory_space<vmem>>, %arg4: memref<4x256xbf16, #tpu.memory_space<vmem>>, %arg5: memref<1x256xf32, #tpu.memory_space<vmem>>, %arg6: memref<128x128xbf16, #tpu.memory_space<vmem>>, %arg7: memref<1x128xf32, #tpu.memory_space<vmem>>, %arg8: memref<128x128xbf16, #tpu.memory_space<vmem>>, %arg9: memref<1x128xf32, #tpu.memory_space<vmem>>, %arg10: memref<256x2xbf16, #tpu.memory_space<vmem>>, %arg11: memref<1x2xf32, #tpu.memory_space<vmem>>, %arg12: memref<8x2xf32, #tpu.memory_space<vmem>>) attributes {dimension_semantics = [#tpu.dimension_semantics<parallel>], iteration_bounds = array<i64: 1>, scalar_prefetch = 0 : i64, scratch_operands = 0 : i64, tpu.core_type = #tpu.core_type<tc>, window_params = [{transform_indices = @transform_0, window_bounds = array<i64: 8, 32>}, {transform_indices = @transform_1, window_bounds = array<i64: 8, 4>}, {pipeline_mode = #tpu.pipeline_mode<synchronous>, transform_indices = @transform_2, window_bounds = array<i64: 32, 256>}, {pipeline_mode = #tpu.pipeline_mode<synchronous>, transform_indices = @transform_3, window_bounds = array<i64: 4, 256>}, {pipeline_mode = #tpu.pipeline_mode<synchronous>, transform_indices = @transform_4, window_bounds = array<i64: 1, 256>}, {pipeline_mode = #tpu.pipeline_mode<synchronous>, transform_indices = @transform_5, window_bounds = array<i64: 128, 128>}, {pipeline_mode = #tpu.pipeline_mode<synchronous>, transform_indices = @transform_6, window_bounds = array<i64: 1, 128>}, {pipeline_mode = #tpu.pipeline_mode<synchronous>, transform_indices = @transform_7, window_bounds = array<i64: 128, 128>}, {pipeline_mode = #tpu.pipeline_mode<synchronous>, transform_indices = @transform_8, window_bounds = array<i64: 1, 128>}, {pipeline_mode = #tpu.pipeline_mode<synchronous>, transform_indices = @transform_9, window_bounds = array<i64: 256, 2>}, {pipeline_mode = #tpu.pipeline_mode<synchronous>, transform_indices = @transform_10, window_bounds = array<i64: 1, 2>}, {transform_indices = @transform_11, window_bounds = array<i64: 8, 2>}]} {
    %c0 = arith.constant 0 : index
    %c0_0 = arith.constant 0 : index
    %0 = vector.load %arg1[%c0, %c0_0] : memref<8x32xf32, #tpu.memory_space<vmem>>, vector<8x32xf32>
    %1 = arith.truncf %0 : vector<8x32xf32> to vector<8x32xbf16>
    %c0_1 = arith.constant 0 : index
    %c0_2 = arith.constant 0 : index
    %2 = vector.load %arg2[%c0_1, %c0_2] : memref<8x4xf32, #tpu.memory_space<vmem>>, vector<8x4xf32>
    %3 = arith.truncf %2 : vector<8x4xf32> to vector<8x4xbf16>
    %c0_3 = arith.constant 0 : index
    %c0_4 = arith.constant 0 : index
    %4 = vector.load %arg3[%c0_3, %c0_4] : memref<32x256xbf16, #tpu.memory_space<vmem>>, vector<32x256xbf16>
    %cst = arith.constant dense<0.000000e+00> : vector<8x256xf32>
    %5 = tpu.matmul %1, %4, %cst {dimension_numbers = #tpu.dot_dimension_numbers<[1], [0], [0], [1], [0, 0, 1, 1], [], []>} : vector<8x32xbf16>, vector<32x256xbf16>, vector<8x256xf32> -> vector<8x256xf32>
    %c0_5 = arith.constant 0 : index
    %c0_6 = arith.constant 0 : index
    %6 = vector.load %arg4[%c0_5, %c0_6] : memref<4x256xbf16, #tpu.memory_space<vmem>>, vector<4x256xbf16>
    %cst_7 = arith.constant dense<0.000000e+00> : vector<8x256xf32>
    %7 = tpu.matmul %3, %6, %cst_7 {dimension_numbers = #tpu.dot_dimension_numbers<[1], [0], [0], [1], [0, 0, 1, 1], [], []>} : vector<8x4xbf16>, vector<4x256xbf16>, vector<8x256xf32> -> vector<8x256xf32>
    %8 = arith.addf %5, %7 : vector<8x256xf32>
    %c0_8 = arith.constant 0 : index
    %c0_9 = arith.constant 0 : index
    %9 = vector.load %arg5[%c0_8, %c0_9] : memref<1x256xf32, #tpu.memory_space<vmem>>, vector<1x256xf32>
    %10 = vector.broadcast %9 : vector<1x256xf32> to vector<8x256xf32>
    %11 = arith.addf %8, %10 : vector<8x256xf32>
    %cst_10 = arith.constant 0.000000e+00 : f32
    %12 = vector.broadcast %cst_10 : f32 to vector<8x256xf32>
    %13 = arith.maximumf %11, %12 : vector<8x256xf32>
    %14 = vector.extract_strided_slice %13 {offsets = [0, 0], sizes = [8, 128], strides = [1, 1]} : vector<8x256xf32> to vector<8x128xf32>
    %15 = arith.truncf %14 : vector<8x128xf32> to vector<8x128xbf16>
    %16 = vector.extract_strided_slice %13 {offsets = [0, 128], sizes = [8, 128], strides = [1, 1]} : vector<8x256xf32> to vector<8x128xf32>
    %17 = arith.truncf %16 : vector<8x128xf32> to vector<8x128xbf16>
    %c0_11 = arith.constant 0 : index
    %c0_12 = arith.constant 0 : index
    %18 = vector.load %arg6[%c0_11, %c0_12] : memref<128x128xbf16, #tpu.memory_space<vmem>>, vector<128x128xbf16>
    %cst_13 = arith.constant dense<0.000000e+00> : vector<8x128xf32>
    %19 = tpu.matmul %15, %18, %cst_13 {dimension_numbers = #tpu.dot_dimension_numbers<[1], [0], [0], [1], [0, 0, 1, 1], [], []>} : vector<8x128xbf16>, vector<128x128xbf16>, vector<8x128xf32> -> vector<8x128xf32>
    %c0_14 = arith.constant 0 : index
    %c0_15 = arith.constant 0 : index
    %20 = vector.load %arg7[%c0_14, %c0_15] : memref<1x128xf32, #tpu.memory_space<vmem>>, vector<1x128xf32>
    %21 = vector.broadcast %20 : vector<1x128xf32> to vector<8x128xf32>
    %22 = arith.addf %19, %21 : vector<8x128xf32>
    %cst_16 = arith.constant 0.000000e+00 : f32
    %23 = vector.broadcast %cst_16 : f32 to vector<8x128xf32>
    %24 = arith.maximumf %22, %23 : vector<8x128xf32>
    %c0_17 = arith.constant 0 : index
    %c0_18 = arith.constant 0 : index
    %25 = vector.load %arg8[%c0_17, %c0_18] : memref<128x128xbf16, #tpu.memory_space<vmem>>, vector<128x128xbf16>
    %cst_19 = arith.constant dense<0.000000e+00> : vector<8x128xf32>
    %26 = tpu.matmul %17, %25, %cst_19 {dimension_numbers = #tpu.dot_dimension_numbers<[1], [0], [0], [1], [0, 0, 1, 1], [], []>} : vector<8x128xbf16>, vector<128x128xbf16>, vector<8x128xf32> -> vector<8x128xf32>
    %c0_20 = arith.constant 0 : index
    %c0_21 = arith.constant 0 : index
    %27 = vector.load %arg9[%c0_20, %c0_21] : memref<1x128xf32, #tpu.memory_space<vmem>>, vector<1x128xf32>
    %28 = vector.broadcast %27 : vector<1x128xf32> to vector<8x128xf32>
    %29 = arith.addf %26, %28 : vector<8x128xf32>
    %cst_22 = arith.constant 0.000000e+00 : f32
    %30 = vector.broadcast %cst_22 : f32 to vector<8x128xf32>
    %31 = arith.maximumf %29, %30 : vector<8x128xf32>
    %32 = tpu.concatenate %24, %31 in 1 : vector<8x128xf32>, vector<8x128xf32> -> vector<8x256xf32>
    %33 = arith.truncf %32 : vector<8x256xf32> to vector<8x256xbf16>
    %c0_23 = arith.constant 0 : index
    %c0_24 = arith.constant 0 : index
    %34 = vector.load %arg10[%c0_23, %c0_24] : memref<256x2xbf16, #tpu.memory_space<vmem>>, vector<256x2xbf16>
    %cst_25 = arith.constant dense<0.000000e+00> : vector<8x2xf32>
    %35 = tpu.matmul %33, %34, %cst_25 {dimension_numbers = #tpu.dot_dimension_numbers<[1], [0], [0], [1], [0, 0, 1, 1], [], []>} : vector<8x256xbf16>, vector<256x2xbf16>, vector<8x2xf32> -> vector<8x2xf32>
    %c0_26 = arith.constant 0 : index
    %c0_27 = arith.constant 0 : index
    %36 = vector.load %arg11[%c0_26, %c0_27] : memref<1x2xf32, #tpu.memory_space<vmem>>, vector<1x2xf32>
    %37 = vector.broadcast %36 : vector<1x2xf32> to vector<8x2xf32>
    %38 = arith.addf %35, %37 : vector<8x2xf32>
    %c0_28 = arith.constant 0 : index
    %c0_29 = arith.constant 0 : index
    %39 = vector.load %arg12[%c0_28, %c0_29] : memref<8x2xf32, #tpu.memory_space<vmem>>, vector<8x2xf32>
    tpu.vector_store %arg12[%c0_28, %c0_29], %38 {strides = array<i32>} : memref<8x2xf32, #tpu.memory_space<vmem>>, vector<8x2xf32>,
    return
  }
  func.func @transform_0(%arg0: i32) -> (i32, i32) {
    %c0_i32 = arith.constant 0 : i32
    %c0_i32_0 = arith.constant 0 : i32
    return %arg0, %c0_i32 : i32, i32
  }
  func.func @transform_1(%arg0: i32) -> (i32, i32) {
    %c0_i32 = arith.constant 0 : i32
    %c0_i32_0 = arith.constant 0 : i32
    return %arg0, %c0_i32 : i32, i32
  }
  func.func @transform_2(%arg0: i32) -> (i32, i32) {
    %c0_i32 = arith.constant 0 : i32
    %c0_i32_0 = arith.constant 0 : i32
    %c0_i32_1 = arith.constant 0 : i32
    return %c0_i32, %c0_i32_0 : i32, i32
  }
  func.func @transform_3(%arg0: i32) -> (i32, i32) {
    %c0_i32 = arith.constant 0 : i32
    %c0_i32_0 = arith.constant 0 : i32
    %c0_i32_1 = arith.constant 0 : i32
    return %c0_i32, %c0_i32_0 : i32, i32
  }
  func.func @transform_4(%arg0: i32) -> (i32, i32) {
    %c0_i32 = arith.constant 0 : i32
    %c0_i32_0 = arith.constant 0 : i32
    %c0_i32_1 = arith.constant 0 : i32
    return %c0_i32, %c0_i32_0 : i32, i32
  }
  func.func @transform_5(%arg0: i32) -> (i32, i32) {
    %c0_i32 = arith.constant 0 : i32
    %c0_i32_0 = arith.constant 0 : i32
    %c0_i32_1 = arith.constant 0 : i32
    return %c0_i32, %c0_i32_0 : i32, i32
  }
  func.func @transform_6(%arg0: i32) -> (i32, i32) {
    %c0_i32 = arith.constant 0 : i32
    %c0_i32_0 = arith.constant 0 : i32
    %c0_i32_1 = arith.constant 0 : i32
    return %c0_i32, %c0_i32_0 : i32, i32
  }
  func.func @transform_7(%arg0: i32) -> (i32, i32) {
    %c0_i32 = arith.constant 0 : i32
    %c0_i32_0 = arith.constant 0 : i32
    %c0_i32_1 = arith.constant 0 : i32
    return %c0_i32, %c0_i32_0 : i32, i32
  }
  func.func @transform_8(%arg0: i32) -> (i32, i32) {
    %c0_i32 = arith.constant 0 : i32
    %c0_i32_0 = arith.constant 0 : i32
    %c0_i32_1 = arith.constant 0 : i32
    return %c0_i32, %c0_i32_0 : i32, i32
  }
  func.func @transform_9(%arg0: i32) -> (i32, i32) {
    %c0_i32 = arith.constant 0 : i32
    %c0_i32_0 = arith.constant 0 : i32
    %c0_i32_1 = arith.constant 0 : i32
    return %c0_i32, %c0_i32_0 : i32, i32
  }
  func.func @transform_10(%arg0: i32) -> (i32, i32) {
    %c0_i32 = arith.constant 0 : i32
    %c0_i32_0 = arith.constant 0 : i32
    %c0_i32_1 = arith.constant 0 : i32
    return %c0_i32, %c0_i32_0 : i32, i32
  }
  func.func @transform_11(%arg0: i32) -> (i32, i32) {
    %c0_i32 = arith.constant 0 : i32
    %c0_i32_0 = arith.constant 0 : i32
    return %arg0, %c0_i32 : i32, i32
  }
}

</mosaic_0001>

<llo_original>
// kernel: tpu_custom_call.1
$region0: #{tpu_custom_call.1}
  #allocation0 [shape = 'u32[]', space=smem, size = 0x4, offset = 0x4, fixed_abs, tag = 'smem constant byte address 0x4 - core index']
  #allocation1 [shape = 'u32[144,128]{1,0:T(1,128)}', space=vmem, size = 0x12000, scoped, tag = 'internal scratch']
  %s0 = inlined_call_operand.vmem [shape: f32[8,32], index: 0, kind: input, shape index: {}]
  %s1 = inlined_call_operand.vmem [shape: f32[8,4], index: 1, kind: input, shape index: {}]
  %s2 = inlined_call_operand.hbm [shape: bf16[32,256], index: 2, kind: input, shape index: {}]
  %s3 = inlined_call_operand.vmem [shape: bf16[4,256], index: 3, kind: input, shape index: {}]
  %s4 = inlined_call_operand.vmem [shape: f32[1,256], index: 4, kind: input, shape index: {}]
  %s5 = inlined_call_operand.vmem [shape: bf16[128,128], index: 5, kind: input, shape index: {}]
  %s6 = inlined_call_operand.vmem [shape: f32[1,128], index: 6, kind: input, shape index: {}]
  %s7 = inlined_call_operand.vmem [shape: bf16[128,128], index: 7, kind: input, shape index: {}]
  %s8 = inlined_call_operand.vmem [shape: f32[1,128], index: 8, kind: input, shape index: {}]
  %s9 = inlined_call_operand.vmem [shape: bf16[256,2], index: 9, kind: input, shape index: {}]
  %s10 = inlined_call_operand.vmem [shape: f32[1,2], index: 10, kind: input, shape index: {}]
  %s11 = inlined_call_operand.vmem [shape: f32[8,2], index: 11, kind: output, shape index: {}]
  %s12 = sld [smem:[#allocation0]]
  $region58: #{tpu_custom_call.1} parent=0
    _
  %s14 = ssub.s32 1, %s12
  %s15 = scalar_select 0, %s14, %s12
  $region1: #{tpu_custom_call.1} parent=0
    #allocation2 [shape = 'u8[16384]{0}', space=vmem, size = 0x4000, scoped, tag = 'input window, operand 2, single buffered']
    #allocation3 [shape = 's32[1]{0}', space=sflag, size = 0x4, scoped, tag = 'scoped memory for tpu_custom_call.1']
    %16 = vsyncpa [#allocation3], 0
    // Predicated region
    $region2: #{tpu_custom_call.1} parent=1 // pred_check
      _
    $region3: #{tpu_custom_call.1} parent=1 // pred_check_branch
      %18 = sbr.rel (0) target = $region5
    $region4: #{tpu_custom_call.1} parent=1 // pred_region
      _
    $region5: #{tpu_custom_call.1} parent=1 // pred_fallthru
      _
    // Predicated region
    $region6: #{tpu_custom_call.1} parent=1 // pred_check
      _
    $region7: #{tpu_custom_call.1} parent=1 // pred_check_branch
      %20 = sbr.rel (0) target = $region9
    $region8: #{tpu_custom_call.1} parent=1 // pred_region
      _
    $region9: #{tpu_custom_call.1} parent=1 // pred_fallthru
      _
    // Predicated region
    $region10: #{tpu_custom_call.1} parent=1 // pred_check
      _
    $region11: #{tpu_custom_call.1} parent=1 // pred_check_branch
      %22 = sbr.rel (0) target = $region13
    $region12: #{tpu_custom_call.1} parent=1 // pred_region
      %s24 = ssub.s32 512, 512
      %25 = vsyncadd [#allocation3], %s24
      %s26 = sshll.u32 [#allocation2], 4
      %s27 = int_to_ptr.vmem [resolvable:$true] %s26
      %32 = dma.hbm_to_vmem [thread:$0]  %s2, 512, %s27, [#allocation3], 128, 128, 8
    $region13: #{tpu_custom_call.1} parent=1 // pred_fallthru
      _
    // Predicated region
    $region14: #{tpu_custom_call.1} parent=1 // pred_check
      _
    $region15: #{tpu_custom_call.1} parent=1 // pred_check_branch
      %34 = sbr.rel (0) target = $region17
    $region16: #{tpu_custom_call.1} parent=1 // pred_region
      _
    $region17: #{tpu_custom_call.1} parent=1 // pred_fallthru
      _
    // Predicated region
    $region18: #{tpu_custom_call.1} parent=1 // pred_check
      _
    $region19: #{tpu_custom_call.1} parent=1 // pred_check_branch
      %36 = sbr.rel (0) target = $region21
    $region20: #{tpu_custom_call.1} parent=1 // pred_region
      _
    $region21: #{tpu_custom_call.1} parent=1 // pred_fallthru
      _
    // Predicated region
    $region22: #{tpu_custom_call.1} parent=1 // pred_check
      _
    $region23: #{tpu_custom_call.1} parent=1 // pred_check_branch
      %38 = sbr.rel (0) target = $region25
    $region24: #{tpu_custom_call.1} parent=1 // pred_region
      _
    $region25: #{tpu_custom_call.1} parent=1 // pred_fallthru
      _
    // Predicated region
    $region26: #{tpu_custom_call.1} parent=1 // pred_check
      _
    $region27: #{tpu_custom_call.1} parent=1 // pred_check_branch
      %40 = sbr.rel (0) target = $region29
    $region28: #{tpu_custom_call.1} parent=1 // pred_region
      _
    $region29: #{tpu_custom_call.1} parent=1 // pred_fallthru
      _
    // Predicated region
    $region30: #{tpu_custom_call.1} parent=1 // pred_check
      _
    $region31: #{tpu_custom_call.1} parent=1 // pred_check_branch
      %42 = sbr.rel (0) target = $region33
    $region32: #{tpu_custom_call.1} parent=1 // pred_region
      _
    $region33: #{tpu_custom_call.1} parent=1 // pred_fallthru
      _
    // Predicated region
    $region34: #{tpu_custom_call.1} parent=1 // pred_check
      _
    $region35: #{tpu_custom_call.1} parent=1 // pred_check_branch
      %44 = sbr.rel (0) target = $region37
    $region36: #{tpu_custom_call.1} parent=1 // pred_region
      _
    $region37: #{tpu_custom_call.1} parent=1 // pred_fallthru
      _
    // Predicated region
    $region38: #{tpu_custom_call.1} parent=1 // pred_check
      _
    $region39: #{tpu_custom_call.1} parent=1 // pred_check_branch
      %46 = sbr.rel (0) target = $region41
    $region40: #{tpu_custom_call.1} parent=1 // pred_region
      _
    $region41: #{tpu_custom_call.1} parent=1 // pred_fallthru
      _
    // Predicated region
    $region42: #{tpu_custom_call.1} parent=1 // pred_check
      _
    $region43: #{tpu_custom_call.1} parent=1 // pred_check_branch
      %48 = sbr.rel (0) target = $region45
    $region44: #{tpu_custom_call.1} parent=1 // pred_region
      _
    $region45: #{tpu_custom_call.1} parent=1 // pred_fallthru
      _
    // Predicated region
    $region46: #{tpu_custom_call.1} parent=1 // pred_check
      _
    $region47: #{tpu_custom_call.1} parent=1 // pred_check_branch
      %50 = sbr.rel (0) target = $region49
    $region48: #{tpu_custom_call.1} parent=1 // pred_region
      %51 = dma.done [#allocation3], 512
    $region49: #{tpu_custom_call.1} parent=1 // pred_fallthru
      _
    %v53 = vld [vmem:[%s0] sm:$0xff]
    %v54 = vpack.c.bf16 %v53, %v53
    %v55 = vld [vmem:[%s1] sm:$0xff]
    %v56 = vpack.c.bf16 %v55, %v55
    %v57 = vld [vmem:[#allocation2] sm:$0xff]
    %v58 = vld [vmem:[#allocation2 + $0x8] sm:$0xff]
    %v59 = vld [vmem:[#allocation2 + $0x10] sm:$0xff]
    %v60 = vld [vmem:[#allocation2 + $0x18] sm:$0xff]
    %v61 = vld [vmem:[%s3] sm:$0xf]
    %v64 = vunpack.c.l.s4 1983009808
    %v65 = vunpack.c.0.s8 %v64
    %v66 = vlaneseq
    %v67 = vshrl.u32 %v66, 7
    %v68 = vsub.s32 %v65, %v67
    %v69 = vrot.slane %v61, %v68
    %v70 = vcombine.high %v69, %v69
    %vm71 = vcmask 31744
    %v73 = vsel %vm71, %v56, 0
    %vm75 = vcmask 1041408
    %v77 = vsel %vm75, %v69, 0
    %v80 = vsel %vm75, %v70, 0
    %82 = vmatprep.subr.bf16.mxu0 0
    %83 = vmatpush1.bf16.msra.mxu0 0
    %84 = vmatprep.subr.bf16.mxu0 0
    %85 = vmatpush1.bf16.msra.mxu0 0
    %86 = vmatprep.subr.bf16.mxu0 0
    %87 = vmatpush1.bf16.msra.mxu0 0
    %88 = vmatprep.subr.bf16.mxu0 0
    %89 = vmatpush1.bf16.msra.mxu0 0
    %90 = vmatprep.subr.bf16.mxu0 0
    %91 = vmatpush1.bf16.msra.mxu0 0
    %92 = vmatprep.subr.bf16.mxu0 0
    %93 = vmatpush1.bf16.msra.mxu0 0
    %94 = vmatprep.subr.bf16.mxu0 0
    %95 = vmatpush1.bf16.msra.mxu0 0
    %96 = vmatprep.subr.bf16.mxu0 %v80
    %97 = vmatpush1.bf16.msra.mxu0 %v77
    %98 = vmatprep.subr.bf16.mxu0 0
    %99 = vmatpush2.bf16.msra.mxu0 0
    %100 = vmatprep.subr.bf16.mxu0 0
    %101 = vmatpush2.bf16.msra.mxu0 0
    %102 = vmatprep.subr.bf16.mxu0 0
    %103 = vmatpush2.bf16.msra.mxu0 0
    %104 = vmatprep.subr.bf16.mxu0 0
    %105 = vmatpush2.bf16.msra.mxu0 0
    %106 = vmatprep.subr.bf16.mxu0 0
    %107 = vmatpush2.bf16.msra.mxu0 0
    %108 = vmatprep.subr.bf16.mxu0 0
    %109 = vmatpush2.bf16.msra.mxu0 0
    %110 = vmatprep.subr.bf16.mxu0 0
    %111 = vmatpush2.bf16.msra.mxu0 0
    %112 = vmatprep.subr.bf16.mxu0 0
    %113 = vmatpush2.bf16.msra.mxu0 0
    %114 = vmatprep.mubr.bf16.mxu0 0
    %115 = vmatmul.mubr.bf16.gmra.mxu0 %v73
    %v116 = vpop.f32.mrf.mxu0
    %v117 = vadd.f32 0.0, %v116
    %v118 = vpop.f32.mrf.mxu0
    %v119 = vadd.f32 0.0, %v118
    %v120 = vpop.f32.mrf.mxu0
    %v121 = vpop.f32.mrf.mxu0
    %122 = vdwg.mxu0
    %v127 = vunpack.c.l.b16 %v57
    %v128 = vunpack.c.h.b16 %v57
    %v129 = vunpack.c.l.b16 %v58
    %v130 = vunpack.c.h.b16 %v58
    %v131 = vunpack.c.l.b16 %v59
    %v132 = vunpack.c.h.b16 %v59
    %v133 = vunpack.c.l.b16 %v60
    %v134 = vunpack.c.h.b16 %v60
    %v135 = vpack.c.b16 %v129, %v127
    %v136 = vpack.c.b16 %v130, %v128
    %v137 = vpack.c.b16 %v133, %v131
    %v138 = vpack.c.b16 %v134, %v132
    %vm143 = vcmask 261120
    %v145 = vsel %vm143, %v54, 0
    %147 = vmatprep.subr.bf16.mxu0 0
    %148 = vmatpush1.bf16.msra.mxu0 0
    %149 = vmatprep.subr.bf16.mxu0 0
    %150 = vmatpush1.bf16.msra.mxu0 0
    %151 = vmatprep.subr.bf16.mxu0 0
    %152 = vmatpush1.bf16.msra.mxu0 0
    %153 = vmatprep.subr.bf16.mxu0 0
    %154 = vmatpush1.bf16.msra.mxu0 0
    %155 = vmatprep.subr.bf16.mxu0 0
    %156 = vmatpush1.bf16.msra.mxu0 0
    %157 = vmatprep.subr.bf16.mxu0 0
    %158 = vmatpush1.bf16.msra.mxu0 0
    %159 = vmatprep.subr.bf16.mxu0 %v138
    %160 = vmatpush1.bf16.msra.mxu0 %v137
    %161 = vmatprep.subr.bf16.mxu0 %v136
    %162 = vmatpush1.bf16.msra.mxu0 %v135
    %163 = vmatprep.subr.bf16.mxu0 0
    %164 = vmatpush2.bf16.msra.mxu0 0
    %165 = vmatprep.subr.bf16.mxu0 0
    %166 = vmatpush2.bf16.msra.mxu0 0
    %167 = vmatprep.subr.bf16.mxu0 0
    %168 = vmatpush2.bf16.msra.mxu0 0
    %169 = vmatprep.subr.bf16.mxu0 0
    %170 = vmatpush2.bf16.msra.mxu0 0
    %171 = vmatprep.subr.bf16.mxu0 0
    %172 = vmatpush2.bf16.msra.mxu0 0
    %173 = vmatprep.subr.bf16.mxu0 0
    %174 = vmatpush2.bf16.msra.mxu0 0
    %175 = vmatprep.subr.bf16.mxu0 0
    %176 = vmatpush2.bf16.msra.mxu0 0
    %177 = vmatprep.subr.bf16.mxu0 0
    %178 = vmatpush2.bf16.msra.mxu0 0
    %179 = vmatprep.mubr.bf16.mxu0 0
    %180 = vmatmul.mubr.bf16.gmra.mxu0 %v145
    %v181 = vpop.f32.mrf.mxu0
    %v182 = vadd.f32 %v117, %v181
    %v183 = vpop.f32.mrf.mxu0
    %v184 = vadd.f32 %v119, %v183
    %v185 = vpop.f32.mrf.mxu0
    %v186 = vpop.f32.mrf.mxu0
    %187 = vdwg.mxu0
    %v188 = vld [vmem:[%s4] sm:$0x3]
    %v190 = vlaneseq
    %v191 = vshrl.u32 %v190, 7
    %v192 = vsub.s32 0, %v191
    %v193 = vrot.slane %v188, %v192
    %v194 = vlaneseq
    %v195 = vshrl.u32 %v194, 7
    %v196 = vsub.s32 1, %v195
    %v197 = vrot.slane %v188, %v196
    %v200 = vadd.f32 %v182, %v193
    %v201 = vadd.f32 %v184, %v197
    %v202 = vmax.f32 %v200, 0.0
    %v203 = vmax.f32 %v201, 0.0
    %v204 = vpack.c.bf16 %v202, %v202
    %v205 = vpack.c.bf16 %v203, %v203
    %v206 = vld [vmem:[%s5] sm:$0xf]
    %v207 = vld [vmem:[%s5 + $0x4] sm:$0xf]
    %v208 = vld [vmem:[%s5 + $0x8] sm:$0xf]
    %v209 = vld [vmem:[%s5 + $0xc] sm:$0xf]
    %v210 = vld [vmem:[%s5 + $0x10] sm:$0xf]
    %v211 = vld [vmem:[%s5 + $0x14] sm:$0xf]
    %v212 = vld [vmem:[%s5 + $0x18] sm:$0xf]
    %v213 = vld [vmem:[%s5 + $0x1c] sm:$0xf]
    %v214 = vld [vmem:[%s5 + $0x20] sm:$0xf]
    %v215 = vld [vmem:[%s5 + $0x24] sm:$0xf]
    %v216 = vld [vmem:[%s5 + $0x28] sm:$0xf]
    %v217 = vld [vmem:[%s5 + $0x2c] sm:$0xf]
    %v218 = vld [vmem:[%s5 + $0x30] sm:$0xf]
    %v219 = vld [vmem:[%s5 + $0x34] sm:$0xf]
    %v220 = vld [vmem:[%s5 + $0x38] sm:$0xf]
    %v221 = vld [vmem:[%s5 + $0x3c] sm:$0xf]
    %v222 = vld [vmem:[%s6] sm:$0x1]
    %v224 = vlaneseq
    %v225 = vshrl.u32 %v224, 7
    %v226 = vsub.s32 0, %v225
    %v227 = vrot.slane %v222, %v226
    %v245 = vunpack.c.l.b16 %v206
    %v246 = vunpack.c.l.b16 %v207
    %v247 = vunpack.c.l.b16 %v208
    %v248 = vunpack.c.l.b16 %v209
    %v249 = vunpack.c.l.b16 %v210
    %v250 = vunpack.c.l.b16 %v211
    %v251 = vunpack.c.l.b16 %v212
    %v252 = vunpack.c.l.b16 %v213
    %v253 = vunpack.c.l.b16 %v214
    %v254 = vunpack.c.l.b16 %v215
    %v255 = vunpack.c.l.b16 %v216
    %v256 = vunpack.c.l.b16 %v217
    %v257 = vunpack.c.l.b16 %v218
    %v258 = vunpack.c.l.b16 %v219
    %v259 = vunpack.c.l.b16 %v220
    %v260 = vunpack.c.l.b16 %v221
    %v261 = vpack.c.b16 %v246, %v245
    %v262 = vpack.c.b16 %v248, %v247
    %v263 = vpack.c.b16 %v250, %v249
    %v264 = vpack.c.b16 %v252, %v251
    %v265 = vpack.c.b16 %v254, %v253
    %v266 = vpack.c.b16 %v256, %v255
    %v267 = vpack.c.b16 %v258, %v257
    %v268 = vpack.c.b16 %v260, %v259
    %277 = vmatprep.subr.bf16.mxu0 0
    %278 = vmatpush1.bf16.msra.mxu0 %v268
    %279 = vmatprep.subr.bf16.mxu0 0
    %280 = vmatpush1.bf16.msra.mxu0 %v267
    %281 = vmatprep.subr.bf16.mxu0 0
    %282 = vmatpush1.bf16.msra.mxu0 %v266
    %283 = vmatprep.subr.bf16.mxu0 0
    %284 = vmatpush1.bf16.msra.mxu0 %v265
    %285 = vmatprep.subr.bf16.mxu0 0
    %286 = vmatpush1.bf16.msra.mxu0 %v264
    %287 = vmatprep.subr.bf16.mxu0 0
    %288 = vmatpush1.bf16.msra.mxu0 %v263
    %289 = vmatprep.subr.bf16.mxu0 0
    %290 = vmatpush1.bf16.msra.mxu0 %v262
    %291 = vmatprep.subr.bf16.mxu0 0
    %292 = vmatpush1.bf16.msra.mxu0 %v261
    %293 = vmatprep.subr.bf16.mxu0 0
    %294 = vmatpush2.bf16.msra.mxu0 0
    %295 = vmatprep.subr.bf16.mxu0 0
    %296 = vmatpush2.bf16.msra.mxu0 0
    %297 = vmatprep.subr.bf16.mxu0 0
    %298 = vmatpush2.bf16.msra.mxu0 0
    %299 = vmatprep.subr.bf16.mxu0 0
    %300 = vmatpush2.bf16.msra.mxu0 0
    %301 = vmatprep.subr.bf16.mxu0 0
    %302 = vmatpush2.bf16.msra.mxu0 0
    %303 = vmatprep.subr.bf16.mxu0 0
    %304 = vmatpush2.bf16.msra.mxu0 0
    %305 = vmatprep.subr.bf16.mxu0 0
    %306 = vmatpush2.bf16.msra.mxu0 0
    %307 = vmatprep.subr.bf16.mxu0 0
    %308 = vmatpush2.bf16.msra.mxu0 0
    %309 = vmatprep.mubr.bf16.mxu0 0
    %310 = vmatmul.mubr.bf16.gmra.mxu0 %v204
    %v311 = vpop.f32.mrf.mxu0
    %v312 = vadd.f32 %v227, %v311
    %v313 = vpop.f32.mrf.mxu0
    %v314 = vpop.f32.mrf.mxu0
    %v315 = vpop.f32.mrf.mxu0
    %316 = vdwg.mxu0
    %v317 = vmax.f32 %v312, 0.0
    %v318 = vld [vmem:[%s7] sm:$0xf]
    %v319 = vld [vmem:[%s7 + $0x4] sm:$0xf]
    %v320 = vld [vmem:[%s7 + $0x8] sm:$0xf]
    %v321 = vld [vmem:[%s7 + $0xc] sm:$0xf]
    %v322 = vld [vmem:[%s7 + $0x10] sm:$0xf]
    %v323 = vld [vmem:[%s7 + $0x14] sm:$0xf]
    %v324 = vld [vmem:[%s7 + $0x18] sm:$0xf]
    %v325 = vld [vmem:[%s7 + $0x1c] sm:$0xf]
    %v326 = vld [vmem:[%s7 + $0x20] sm:$0xf]
    %v327 = vld [vmem:[%s7 + $0x24] sm:$0xf]
    %v328 = vld [vmem:[%s7 + $0x28] sm:$0xf]
    %v329 = vld [vmem:[%s7 + $0x2c] sm:$0xf]
    %v330 = vld [vmem:[%s7 + $0x30] sm:$0xf]
    %v331 = vld [vmem:[%s7 + $0x34] sm:$0xf]
    %v332 = vld [vmem:[%s7 + $0x38] sm:$0xf]
    %v333 = vld [vmem:[%s7 + $0x3c] sm:$0xf]
    %v334 = vld [vmem:[%s8] sm:$0x1]
    %v336 = vlaneseq
    %v337 = vshrl.u32 %v336, 7
    %v338 = vsub.s32 0, %v337
    %v339 = vrot.slane %v334, %v338
    %v357 = vunpack.c.l.b16 %v318
    %v358 = vunpack.c.l.b16 %v319
    %v359 = vunpack.c.l.b16 %v320
    %v360 = vunpack.c.l.b16 %v321
    %v361 = vunpack.c.l.b16 %v322
    %v362 = vunpack.c.l.b16 %v323
    %v363 = vunpack.c.l.b16 %v324
    %v364 = vunpack.c.l.b16 %v325
    %v365 = vunpack.c.l.b16 %v326
    %v366 = vunpack.c.l.b16 %v327
    %v367 = vunpack.c.l.b16 %v328
    %v368 = vunpack.c.l.b16 %v329
    %v369 = vunpack.c.l.b16 %v330
    %v370 = vunpack.c.l.b16 %v331
    %v371 = vunpack.c.l.b16 %v332
    %v372 = vunpack.c.l.b16 %v333
    %v373 = vpack.c.b16 %v358, %v357
    %v374 = vpack.c.b16 %v360, %v359
    %v375 = vpack.c.b16 %v362, %v361
    %v376 = vpack.c.b16 %v364, %v363
    %v377 = vpack.c.b16 %v366, %v365
    %v378 = vpack.c.b16 %v368, %v367
    %v379 = vpack.c.b16 %v370, %v369
    %v380 = vpack.c.b16 %v372, %v371
    %389 = vmatprep.subr.bf16.mxu0 0
    %390 = vmatpush1.bf16.msra.mxu0 %v380
    %391 = vmatprep.subr.bf16.mxu0 0
    %392 = vmatpush1.bf16.msra.mxu0 %v379
    %393 = vmatprep.subr.bf16.mxu0 0
    %394 = vmatpush1.bf16.msra.mxu0 %v378
    %395 = vmatprep.subr.bf16.mxu0 0
    %396 = vmatpush1.bf16.msra.mxu0 %v377
    %397 = vmatprep.subr.bf16.mxu0 0
    %398 = vmatpush1.bf16.msra.mxu0 %v376
    %399 = vmatprep.subr.bf16.mxu0 0
    %400 = vmatpush1.bf16.msra.mxu0 %v375
    %401 = vmatprep.subr.bf16.mxu0 0
    %402 = vmatpush1.bf16.msra.mxu0 %v374
    %403 = vmatprep.subr.bf16.mxu0 0
    %404 = vmatpush1.bf16.msra.mxu0 %v373
    %405 = vmatprep.subr.bf16.mxu0 0
    %406 = vmatpush2.bf16.msra.mxu0 0
    %407 = vmatprep.subr.bf16.mxu0 0
    %408 = vmatpush2.bf16.msra.mxu0 0
    %409 = vmatprep.subr.bf16.mxu0 0
    %410 = vmatpush2.bf16.msra.mxu0 0
    %411 = vmatprep.subr.bf16.mxu0 0
    %412 = vmatpush2.bf16.msra.mxu0 0
    %413 = vmatprep.subr.bf16.mxu0 0
    %414 = vmatpush2.bf16.msra.mxu0 0
    %415 = vmatprep.subr.bf16.mxu0 0
    %416 = vmatpush2.bf16.msra.mxu0 0
    %417 = vmatprep.subr.bf16.mxu0 0
    %418 = vmatpush2.bf16.msra.mxu0 0
    %419 = vmatprep.subr.bf16.mxu0 0
    %420 = vmatpush2.bf16.msra.mxu0 0
    %421 = vmatprep.mubr.bf16.mxu0 0
    %422 = vmatmul.mubr.bf16.gmra.mxu0 %v205
    %v423 = vpop.f32.mrf.mxu0
    %v424 = vadd.f32 %v339, %v423
    %v425 = vpop.f32.mrf.mxu0
    %v426 = vpop.f32.mrf.mxu0
    %v427 = vpop.f32.mrf.mxu0
    %428 = vdwg.mxu0
    %v429 = vmax.f32 %v424, 0.0
    %v430 = vpack.c.bf16 %v317, %v317
    %v431 = vpack.c.bf16 %v429, %v429
    %v432 = vld [vmem:[%s9] sm:$0xf]
    %v433 = vld [vmem:[%s9 + $0x4] sm:$0xf]
    %v434 = vld [vmem:[%s9 + $0x8] sm:$0xf]
    %v435 = vld [vmem:[%s9 + $0xc] sm:$0xf]
    %v436 = vld [vmem:[%s9 + $0x10] sm:$0xf]
    %v437 = vld [vmem:[%s9 + $0x14] sm:$0xf]
    %v438 = vld [vmem:[%s9 + $0x18] sm:$0xf]
    %v439 = vld [vmem:[%s9 + $0x1c] sm:$0xf]
    %v440 = vld [vmem:[%s9 + $0x20] sm:$0xf]
    %v441 = vld [vmem:[%s9 + $0x24] sm:$0xf]
    %v442 = vld [vmem:[%s9 + $0x28] sm:$0xf]
    %v443 = vld [vmem:[%s9 + $0x2c] sm:$0xf]
    %v444 = vld [vmem:[%s9 + $0x30] sm:$0xf]
    %v445 = vld [vmem:[%s9 + $0x34] sm:$0xf]
    %v446 = vld [vmem:[%s9 + $0x38] sm:$0xf]
    %v447 = vld [vmem:[%s9 + $0x3c] sm:$0xf]
    %v448 = vld [vmem:[%s9 + $0x40] sm:$0xf]
    %v449 = vld [vmem:[%s9 + $0x44] sm:$0xf]
    %v450 = vld [vmem:[%s9 + $0x48] sm:$0xf]
    %v451 = vld [vmem:[%s9 + $0x4c] sm:$0xf]
    %v452 = vld [vmem:[%s9 + $0x50] sm:$0xf]
    %v453 = vld [vmem:[%s9 + $0x54] sm:$0xf]
    %v454 = vld [vmem:[%s9 + $0x58] sm:$0xf]
    %v455 = vld [vmem:[%s9 + $0x5c] sm:$0xf]
    %v456 = vld [vmem:[%s9 + $0x60] sm:$0xf]
    %v457 = vld [vmem:[%s9 + $0x64] sm:$0xf]
    %v458 = vld [vmem:[%s9 + $0x68] sm:$0xf]
    %v459 = vld [vmem:[%s9 + $0x6c] sm:$0xf]
    %v460 = vld [vmem:[%s9 + $0x70] sm:$0xf]
    %v461 = vld [vmem:[%s9 + $0x74] sm:$0xf]
    %v462 = vld [vmem:[%s9 + $0x78] sm:$0xf]
    %v463 = vld [vmem:[%s9 + $0x7c] sm:$0xf]
    %v464 = vld [vmem:[%s10] sm:$0x1]
    %v466 = vlaneseq
    %v467 = vshrl.u32 %v466, 7
    %v468 = vsub.s32 0, %v467
    %v469 = vrot.slane %v464, %v468
    %v503 = vunpack.c.l.b16 %v432
    %v504 = vunpack.c.l.b16 %v433
    %v505 = vunpack.c.l.b16 %v434
    %v506 = vunpack.c.l.b16 %v435
    %v507 = vunpack.c.l.b16 %v436
    %v508 = vunpack.c.l.b16 %v437
    %v509 = vunpack.c.l.b16 %v438
    %v510 = vunpack.c.l.b16 %v439
    %v511 = vunpack.c.l.b16 %v440
    %v512 = vunpack.c.l.b16 %v441
    %v513 = vunpack.c.l.b16 %v442
    %v514 = vunpack.c.l.b16 %v443
    %v515 = vunpack.c.l.b16 %v444
    %v516 = vunpack.c.l.b16 %v445
    %v517 = vunpack.c.l.b16 %v446
    %v518 = vunpack.c.l.b16 %v447
    %v519 = vunpack.c.l.b16 %v448
    %v520 = vunpack.c.l.b16 %v449
    %v521 = vunpack.c.l.b16 %v450
    %v522 = vunpack.c.l.b16 %v451
    %v523 = vunpack.c.l.b16 %v452
    %v524 = vunpack.c.l.b16 %v453
    %v525 = vunpack.c.l.b16 %v454
    %v526 = vunpack.c.l.b16 %v455
    %v527 = vunpack.c.l.b16 %v456
    %v528 = vunpack.c.l.b16 %v457
    %v529 = vunpack.c.l.b16 %v458
    %v530 = vunpack.c.l.b16 %v459
    %v531 = vunpack.c.l.b16 %v460
    %v532 = vunpack.c.l.b16 %v461
    %v533 = vunpack.c.l.b16 %v462
    %v534 = vunpack.c.l.b16 %v463
    %v535 = vpack.c.b16 %v504, %v503
    %v536 = vpack.c.b16 %v506, %v505
    %v537 = vpack.c.b16 %v508, %v507
    %v538 = vpack.c.b16 %v510, %v509
    %v539 = vpack.c.b16 %v512, %v511
    %v540 = vpack.c.b16 %v514, %v513
    %v541 = vpack.c.b16 %v516, %v515
    %v542 = vpack.c.b16 %v518, %v517
    %v543 = vpack.c.b16 %v520, %v519
    %v544 = vpack.c.b16 %v522, %v521
    %v545 = vpack.c.b16 %v524, %v523
    %v546 = vpack.c.b16 %v526, %v525
    %v547 = vpack.c.b16 %v528, %v527
    %v548 = vpack.c.b16 %v530, %v529
    %v549 = vpack.c.b16 %v532, %v531
    %v550 = vpack.c.b16 %v534, %v533
    %567 = vmatprep.subr.bf16.mxu0 0
    %568 = vmatpush1.bf16.msra.mxu0 %v542
    %569 = vmatprep.subr.bf16.mxu0 0
    %570 = vmatpush1.bf16.msra.mxu0 %v541
    %571 = vmatprep.subr.bf16.mxu0 0
    %572 = vmatpush1.bf16.msra.mxu0 %v540
    %573 = vmatprep.subr.bf16.mxu0 0
    %574 = vmatpush1.bf16.msra.mxu0 %v539
    %575 = vmatprep.subr.bf16.mxu0 0
    %576 = vmatpush1.bf16.msra.mxu0 %v538
    %577 = vmatprep.subr.bf16.mxu0 0
    %578 = vmatpush1.bf16.msra.mxu0 %v537
    %579 = vmatprep.subr.bf16.mxu0 0
    %580 = vmatpush1.bf16.msra.mxu0 %v536
    %581 = vmatprep.subr.bf16.mxu0 0
    %582 = vmatpush1.bf16.msra.mxu0 %v535
    %583 = vmatprep.subr.bf16.mxu0 0
    %584 = vmatpush2.bf16.msra.mxu0 %v550
    %585 = vmatprep.subr.bf16.mxu0 0
    %586 = vmatpush2.bf16.msra.mxu0 %v549
    %587 = vmatprep.subr.bf16.mxu0 0
    %588 = vmatpush2.bf16.msra.mxu0 %v548
    %589 = vmatprep.subr.bf16.mxu0 0
    %590 = vmatpush2.bf16.msra.mxu0 %v547
    %591 = vmatprep.subr.bf16.mxu0 0
    %592 = vmatpush2.bf16.msra.mxu0 %v546
    %593 = vmatprep.subr.bf16.mxu0 0
    %594 = vmatpush2.bf16.msra.mxu0 %v545
    %595 = vmatprep.subr.bf16.mxu0 0
    %596 = vmatpush2.bf16.msra.mxu0 %v544
    %597 = vmatprep.subr.bf16.mxu0 0
    %598 = vmatpush2.bf16.msra.mxu0 %v543
    %599 = vmatprep.mubr.bf16.mxu0 %v431
    %600 = vmatmul.mubr.bf16.gmra.mxu0 %v430
    %v601 = vpop.f32.mrf.mxu0
    %v602 = vadd.f32 %v469, %v601
    %v603 = vpop.f32.mrf.mxu0
    %v604 = vpop.f32.mrf.mxu0
    %v605 = vpop.f32.mrf.mxu0
    %606 = vdwg.mxu0
    %vm607 = vcmask 15360
    %608 = vst.msk [vmem:[%s11] sm:$0xff] %vm607, %v602
    // Predicated region
    $region50: #{tpu_custom_call.1} parent=1 // pred_check
      _
    $region51: #{tpu_custom_call.1} parent=1 // pred_check_branch
      %610 = sbr.rel (0) target = $region53
    $region52: #{tpu_custom_call.1} parent=1 // pred_region
      _
    $region53: #{tpu_custom_call.1} parent=1 // pred_fallthru
      _
    // Predicated region
    $region54: #{tpu_custom_call.1} parent=1 // pred_check
      _
    $region55: #{tpu_custom_call.1} parent=1 // pred_check_branch
      %612 = sbr.rel (0) target = $region57
    $region56: #{tpu_custom_call.1} parent=1 // pred_region
      _
    $region57: #{tpu_custom_call.1} parent=1 // pred_fallthru
      _
    %613 = vsyncpa [#allocation3], 1

// kernel: tpu_custom_call.1
$region0: #{tpu_custom_call.1}
  #allocation0 [shape = 'u32[]', space=smem, size = 0x4, offset = 0x4, fixed_abs, tag = 'smem constant byte address 0x4 - core index']
  #allocation1 [shape = 'u32[144,128]{1,0:T(1,128)}', space=vmem, size = 0x12000, scoped, tag = 'internal scratch']
  %s0 = inlined_call_operand.vmem [shape: f32[8,32], index: 0, kind: input, shape index: {}]
  %s1 = inlined_call_operand.vmem [shape: f32[8,4], index: 1, kind: input, shape index: {}]
  %s2 = inlined_call_operand.hbm [shape: bf16[32,256], index: 2, kind: input, shape index: {}]
  %s3 = inlined_call_operand.vmem [shape: bf16[4,256], index: 3, kind: input, shape index: {}]
  %s4 = inlined_call_operand.vmem [shape: f32[1,256], index: 4, kind: input, shape index: {}]
  %s5 = inlined_call_operand.vmem [shape: bf16[128,128], index: 5, kind: input, shape index: {}]
  %s6 = inlined_call_operand.vmem [shape: f32[1,128], index: 6, kind: input, shape index: {}]
  %s7 = inlined_call_operand.vmem [shape: bf16[128,128], index: 7, kind: input, shape index: {}]
  %s8 = inlined_call_operand.vmem [shape: f32[1,128], index: 8, kind: input, shape index: {}]
  %s9 = inlined_call_operand.vmem [shape: bf16[256,2], index: 9, kind: input, shape index: {}]
  %s10 = inlined_call_operand.vmem [shape: f32[1,2], index: 10, kind: input, shape index: {}]
  %s11 = inlined_call_operand.vmem [shape: f32[8,2], index: 11, kind: output, shape index: {}]
  %s12 = sld [smem:[#allocation0]]
  $region58: #{tpu_custom_call.1} parent=0
    _
  %s14 = ssub.s32 1, %s12
  %s15 = scalar_select 0, %s14, %s12
  $region1: #{tpu_custom_call.1} parent=0
    #allocation2 [shape = 'u8[16384]{0}', space=vmem, size = 0x4000, scoped, tag = 'input window, operand 2, single buffered']
    #allocation3 [shape = 's32[1]{0}', space=sflag, size = 0x4, scoped, tag = 'scoped memory for tpu_custom_call.1']
    %16 = vsyncpa [#allocation3], 0
    // Predicated region
    $region2: #{tpu_custom_call.1} parent=1 // pred_check
      _
    $region3: #{tpu_custom_call.1} parent=1 // pred_check_branch
      %18 = sbr.rel (0) target = $region5
    $region4: #{tpu_custom_call.1} parent=1 // pred_region
      _
    $region5: #{tpu_custom_call.1} parent=1 // pred_fallthru
      _
    // Predicated region
    $region6: #{tpu_custom_call.1} parent=1 // pred_check
      _
    $region7: #{tpu_custom_call.1} parent=1 // pred_check_branch
      %20 = sbr.rel (0) target = $region9
    $region8: #{tpu_custom_call.1} parent=1 // pred_region
      _
    $region9: #{tpu_custom_call.1} parent=1 // pred_fallthru
      _
    // Predicated region
    $region10: #{tpu_custom_call.1} parent=1 // pred_check
      _
    $region11: #{tpu_custom_call.1} parent=1 // pred_check_branch
      %22 = sbr.rel (0) target = $region13
    $region12: #{tpu_custom_call.1} parent=1 // pred_region
      %s24 = ssub.s32 512, 512
      %25 = vsyncadd [#allocation3], %s24
      %s26 = sshll.u32 [#allocation2], 4
      %s27 = int_to_ptr.vmem [resolvable:$true] %s26
      %32 = dma.hbm_to_vmem [thread:$0]  %s2, 512, %s27, [#allocation3], 128, 128, 8
    $region13: #{tpu_custom_call.1} parent=1 // pred_fallthru
      _
    // Predicated region
    $region14: #{tpu_custom_call.1} parent=1 // pred_check
      _
    $region15: #{tpu_custom_call.1} parent=1 // pred_check_branch
      %34 = sbr.rel (0) target = $region17
    $region16: #{tpu_custom_call.1} parent=1 // pred_region
      _
    $region17: #{tpu_custom_call.1} parent=1 // pred_fallthru
      _
    // Predicated region
    $region18: #{tpu_custom_call.1} parent=1 // pred_check
      _
    $region19: #{tpu_custom_call.1} parent=1 // pred_check_branch
      %36 = sbr.rel (0) target = $region21
    $region20: #{tpu_custom_call.1} parent=1 // pred_region
      _
    $region21: #{tpu_custom_call.1} parent=1 // pred_fallthru
      _
    // Predicated region
    $region22: #{tpu_custom_call.1} parent=1 // pred_check
      _
    $region23: #{tpu_custom_call.1} parent=1 // pred_check_branch
      %38 = sbr.rel (0) target = $region25
    $region24: #{tpu_custom_call.1} parent=1 // pred_region
      _
    $region25: #{tpu_custom_call.1} parent=1 // pred_fallthru
      _
    // Predicated region
    $region26: #{tpu_custom_call.1} parent=1 // pred_check
      _
    $region27: #{tpu_custom_call.1} parent=1 // pred_check_branch
      %40 = sbr.rel (0) target = $region29
    $region28: #{tpu_custom_call.1} parent=1 // pred_region
      _
    $region29: #{tpu_custom_call.1} parent=1 // pred_fallthru
      _
    // Predicated region
    $region30: #{tpu_custom_call.1} parent=1 // pred_check
      _
    $region31: #{tpu_custom_call.1} parent=1 // pred_check_branch
      %42 = sbr.rel (0) target = $region33
    $region32: #{tpu_custom_call.1} parent=1 // pred_region
      _
    $region33: #{tpu_custom_call.1} parent=1 // pred_fallthru
      _
    // Predicated region
    $region34: #{tpu_custom_call.1} parent=1 // pred_check
      _
    $region35: #{tpu_custom_call.1} parent=1 // pred_check_branch
      %44 = sbr.rel (0) target = $region37
    $region36: #{tpu_custom_call.1} parent=1 // pred_region
      _
    $region37: #{tpu_custom_call.1} parent=1 // pred_fallthru
      _
    // Predicated region
    $region38: #{tpu_custom_call.1} parent=1 // pred_check
      _
    $region39: #{tpu_custom_call.1} parent=1 // pred_check_branch
      %46 = sbr.rel (0) target = $region41
    $region40: #{tpu_custom_call.1} parent=1 // pred_region
      _
    $region41: #{tpu_custom_call.1} parent=1 // pred_fallthru
      _
    // Predicated region
    $region42: #{tpu_custom_call.1} parent=1 // pred_check
      _
    $region43: #{tpu_custom_call.1} parent=1 // pred_check_branch
      %48 = sbr.rel (0) target = $region45
    $region44: #{tpu_custom_call.1} parent=1 // pred_region
      _
    $region45: #{tpu_custom_call.1} parent=1 // pred_fallthru
      _
    // Predicated region
    $region46: #{tpu_custom_call.1} parent=1 // pred_check
      _
    $region47: #{tpu_custom_call.1} parent=1 // pred_check_branch
      %50 = sbr.rel (0) target = $region49
    $region48: #{tpu_custom_call.1} parent=1 // pred_region
      %51 = dma.done [#allocation3], 512
    $region49: #{tpu_custom_call.1} parent=1 // pred_fallthru
      _
    %v53 = vld [vmem:[%s0] sm:$0xff]
    %v54 = vpack.c.bf16 %v53, %v53
    %v55 = vld [vmem:[%s1] sm:$0xff]
    %v56 = vpack.c.bf16 %v55, %v55
    %v57 = vld [vmem:[#allocation2] sm:$0xff]
    %v58 = vld [vmem:[#allocation2 + $0x8] sm:$0xff]
    %v59 = vld [vmem:[#allocation2 + $0x10] sm:$0xff]
    %v60 = vld [vmem:[#allocation2 + $0x18] sm:$0xff]
    %v61 = vld [vmem:[%s3] sm:$0xf]
    %v64 = vunpack.c.l.s4 1983009808
    %v65 = vunpack.c.0.s8 %v64
    %v66 = vlaneseq
    %v67 = vshrl.u32 %v66, 7
    %v68 = vsub.s32 %v65, %v67
    %v69 = vrot.slane %v61, %v68
    %v70 = vcombine.high %v69, %v69
    %vm71 = vcmask 31744
    %v73 = vsel %vm71, %v56, 0
    %vm75 = vcmask 1041408
    %v77 = vsel %vm75, %v69, 0
    %v80 = vsel %vm75, %v70, 0
    %82 = vmatprep.subr.bf16.mxu0 0
    %83 = vmatpush1.bf16.msra.mxu0 0
    %84 = vmatprep.subr.bf16.mxu0 0
    %85 = vmatpush1.bf16.msra.mxu0 0
    %86 = vmatprep.subr.bf16.mxu0 0
    %87 = vmatpush1.bf16.msra.mxu0 0
    %88 = vmatprep.subr.bf16.mxu0 0
    %89 = vmatpush1.bf16.msra.mxu0 0
    %90 = vmatprep.subr.bf16.mxu0 0
    %91 = vmatpush1.bf16.msra.mxu0 0
    %92 = vmatprep.subr.bf16.mxu0 0
    %93 = vmatpush1.bf16.msra.mxu0 0
    %94 = vmatprep.subr.bf16.mxu0 0
    %95 = vmatpush1.bf16.msra.mxu0 0
    %96 = vmatprep.subr.bf16.mxu0 %v80
    %97 = vmatpush1.bf16.msra.mxu0 %v77
    %98 = vmatprep.subr.bf16.mxu0 0
    %99 = vmatpush2.bf16.msra.mxu0 0
    %100 = vmatprep.subr.bf16.mxu0 0
    %101 = vmatpush2.bf16.msra.mxu0 0
    %102 = vmatprep.subr.bf16.mxu0 0
    %103 = vmatpush2.bf16.msra.mxu0 0
    %104 = vmatprep.subr.bf16.mxu0 0
    %105 = vmatpush2.bf16.msra.mxu0 0
    %106 = vmatprep.subr.bf16.mxu0 0
    %107 = vmatpush2.bf16.msra.mxu0 0
    %108 = vmatprep.subr.bf16.mxu0 0
    %109 = vmatpush2.bf16.msra.mxu0 0
    %110 = vmatprep.subr.bf16.mxu0 0
    %111 = vmatpush2.bf16.msra.mxu0 0
    %112 = vmatprep.subr.bf16.mxu0 0
    %113 = vmatpush2.bf16.msra.mxu0 0
    %114 = vmatprep.mubr.bf16.mxu0 0
    %115 = vmatmul.mubr.bf16.gmra.mxu0 %v73
    %v116 = vpop.f32.mrf.mxu0
    %v117 = vadd.f32 0.0, %v116
    %v118 = vpop.f32.mrf.mxu0
    %v119 = vadd.f32 0.0, %v118
    %v120 = vpop.f32.mrf.mxu0
    %v121 = vpop.f32.mrf.mxu0
    %122 = vdwg.mxu0
    %v127 = vunpack.c.l.b16 %v57
    %v128 = vunpack.c.h.b16 %v57
    %v129 = vunpack.c.l.b16 %v58
    %v130 = vunpack.c.h.b16 %v58
    %v131 = vunpack.c.l.b16 %v59
    %v132 = vunpack.c.h.b16 %v59
    %v133 = vunpack.c.l.b16 %v60
    %v134 = vunpack.c.h.b16 %v60
    %v135 = vpack.c.b16 %v129, %v127
    %v136 = vpack.c.b16 %v130, %v128
    %v137 = vpack.c.b16 %v133, %v131
    %v138 = vpack.c.b16 %v134, %v132
    %vm143 = vcmask 261120
    %v145 = vsel %vm143, %v54, 0
    %147 = vmatprep.subr.bf16.mxu0 0
    %148 = vmatpush1.bf16.msra.mxu0 0
    %149 = vmatprep.subr.bf16.mxu0 0
    %150 = vmatpush1.bf16.msra.mxu0 0
    %151 = vmatprep.subr.bf16.mxu0 0
    %152 = vmatpush1.bf16.msra.mxu0 0
    %153 = vmatprep.subr.bf16.mxu0 0
    %154 = vmatpush1.bf16.msra.mxu0 0
    %155 = vmatprep.subr.bf16.mxu0 0
    %156 = vmatpush1.bf16.msra.mxu0 0
    %157 = vmatprep.subr.bf16.mxu0 0
    %158 = vmatpush1.bf16.msra.mxu0 0
    %159 = vmatprep.subr.bf16.mxu0 %v138
    %160 = vmatpush1.bf16.msra.mxu0 %v137
    %161 = vmatprep.subr.bf16.mxu0 %v136
    %162 = vmatpush1.bf16.msra.mxu0 %v135
    %163 = vmatprep.subr.bf16.mxu0 0
    %164 = vmatpush2.bf16.msra.mxu0 0
    %165 = vmatprep.subr.bf16.mxu0 0
    %166 = vmatpush2.bf16.msra.mxu0 0
    %167 = vmatprep.subr.bf16.mxu0 0
    %168 = vmatpush2.bf16.msra.mxu0 0
    %169 = vmatprep.subr.bf16.mxu0 0
    %170 = vmatpush2.bf16.msra.mxu0 0
    %171 = vmatprep.subr.bf16.mxu0 0
    %172 = vmatpush2.bf16.msra.mxu0 0
    %173 = vmatprep.subr.bf16.mxu0 0
    %174 = vmatpush2.bf16.msra.mxu0 0
    %175 = vmatprep.subr.bf16.mxu0 0
    %176 = vmatpush2.bf16.msra.mxu0 0
    %177 = vmatprep.subr.bf16.mxu0 0
    %178 = vmatpush2.bf16.msra.mxu0 0
    %179 = vmatprep.mubr.bf16.mxu0 0
    %180 = vmatmul.mubr.bf16.gmra.mxu0 %v145
    %v181 = vpop.f32.mrf.mxu0
    %v182 = vadd.f32 %v117, %v181
    %v183 = vpop.f32.mrf.mxu0
    %v184 = vadd.f32 %v119, %v183
    %v185 = vpop.f32.mrf.mxu0
    %v186 = vpop.f32.mrf.mxu0
    %187 = vdwg.mxu0
    %v188 = vld [vmem:[%s4] sm:$0x3]
    %v190 = vlaneseq
    %v191 = vshrl.u32 %v190, 7
    %v192 = vsub.s32 0, %v191
    %v193 = vrot.slane %v188, %v192
    %v194 = vlaneseq
    %v195 = vshrl.u32 %v194, 7
    %v196 = vsub.s32 1, %v195
    %v197 = vrot.slane %v188, %v196
    %v200 = vadd.f32 %v182, %v193
    %v201 = vadd.f32 %v184, %v197
    %v202 = vmax.f32 %v200, 0.0
    %v203 = vmax.f32 %v201, 0.0
    %v204 = vpack.c.bf16 %v202, %v202
    %v205 = vpack.c.bf16 %v203, %v203
    %v206 = vld [vmem:[%s5] sm:$0xf]
    %v207 = vld [vmem:[%s5 + $0x4] sm:$0xf]
    %v208 = vld [vmem:[%s5 + $0x8] sm:$0xf]
    %v209 = vld [vmem:[%s5 + $0xc] sm:$0xf]
    %v210 = vld [vmem:[%s5 + $0x10] sm:$0xf]
    %v211 = vld [vmem:[%s5 + $0x14] sm:$0xf]
    %v212 = vld [vmem:[%s5 + $0x18] sm:$0xf]
    %v213 = vld [vmem:[%s5 + $0x1c] sm:$0xf]
    %v214 = vld [vmem:[%s5 + $0x20] sm:$0xf]
    %v215 = vld [vmem:[%s5 + $0x24] sm:$0xf]
    %v216 = vld [vmem:[%s5 + $0x28] sm:$0xf]
    %v217 = vld [vmem:[%s5 + $0x2c] sm:$0xf]
    %v218 = vld [vmem:[%s5 + $0x30] sm:$0xf]
    %v219 = vld [vmem:[%s5 + $0x34] sm:$0xf]
    %v220 = vld [vmem:[%s5 + $0x38] sm:$0xf]
    %v221 = vld [vmem:[%s5 + $0x3c] sm:$0xf]
    %v222 = vld [vmem:[%s6] sm:$0x1]
    %v224 = vlaneseq
    %v225 = vshrl.u32 %v224, 7
    %v226 = vsub.s32 0, %v225
    %v227 = vrot.slane %v222, %v226
    %v245 = vunpack.c.l.b16 %v206
    %v246 = vunpack.c.l.b16 %v207
    %v247 = vunpack.c.l.b16 %v208
    %v248 = vunpack.c.l.b16 %v209
    %v249 = vunpack.c.l.b16 %v210
    %v250 = vunpack.c.l.b16 %v211
    %v251 = vunpack.c.l.b16 %v212
    %v252 = vunpack.c.l.b16 %v213
    %v253 = vunpack.c.l.b16 %v214
    %v254 = vunpack.c.l.b16 %v215
    %v255 = vunpack.c.l.b16 %v216
    %v256 = vunpack.c.l.b16 %v217
    %v257 = vunpack.c.l.b16 %v218
    %v258 = vunpack.c.l.b16 %v219
    %v259 = vunpack.c.l.b16 %v220
    %v260 = vunpack.c.l.b16 %v221
    %v261 = vpack.c.b16 %v246, %v245
    %v262 = vpack.c.b16 %v248, %v247
    %v263 = vpack.c.b16 %v250, %v249
    %v264 = vpack.c.b16 %v252, %v251
    %v265 = vpack.c.b16 %v254, %v253
    %v266 = vpack.c.b16 %v256, %v255
    %v267 = vpack.c.b16 %v258, %v257
    %v268 = vpack.c.b16 %v260, %v259
    %277 = vmatprep.subr.bf16.mxu0 0
    %278 = vmatpush1.bf16.msra.mxu0 %v268
    %279 = vmatprep.subr.bf16.mxu0 0
    %280 = vmatpush1.bf16.msra.mxu0 %v267
    %281 = vmatprep.subr.bf16.mxu0 0
    %282 = vmatpush1.bf16.msra.mxu0 %v266
    %283 = vmatprep.subr.bf16.mxu0 0
    %284 = vmatpush1.bf16.msra.mxu0 %v265
    %285 = vmatprep.subr.bf16.mxu0 0
    %286 = vmatpush1.bf16.msra.mxu0 %v264
    %287 = vmatprep.subr.bf16.mxu0 0
    %288 = vmatpush1.bf16.msra.mxu0 %v263
    %289 = vmatprep.subr.bf16.mxu0 0
    %290 = vmatpush1.bf16.msra.mxu0 %v262
    %291 = vmatprep.subr.bf16.mxu0 0
    %292 = vmatpush1.bf16.msra.mxu0 %v261
    %293 = vmatprep.subr.bf16.mxu0 0
    %294 = vmatpush2.bf16.msra.mxu0 0
    %295 = vmatprep.subr.bf16.mxu0 0
    %296 = vmatpush2.bf16.msra.mxu0 0
    %297 = vmatprep.subr.bf16.mxu0 0
    %298 = vmatpush2.bf16.msra.mxu0 0
    %299 = vmatprep.subr.bf16.mxu0 0
    %300 = vmatpush2.bf16.msra.mxu0 0
    %301 = vmatprep.subr.bf16.mxu0 0
    %302 = vmatpush2.bf16.msra.mxu0 0
    %303 = vmatprep.subr.bf16.mxu0 0
    %304 = vmatpush2.bf16.msra.mxu0 0
    %305 = vmatprep.subr.bf16.mxu0 0
    %306 = vmatpush2.bf16.msra.mxu0 0
    %307 = vmatprep.subr.bf16.mxu0 0
    %308 = vmatpush2.bf16.msra.mxu0 0
    %309 = vmatprep.mubr.bf16.mxu0 0
    %310 = vmatmul.mubr.bf16.gmra.mxu0 %v204
    %v311 = vpop.f32.mrf.mxu0
    %v312 = vadd.f32 %v227, %v311
    %v313 = vpop.f32.mrf.mxu0
    %v314 = vpop.f32.mrf.mxu0
    %v315 = vpop.f32.mrf.mxu0
    %316 = vdwg.mxu0
    %v317 = vmax.f32 %v312, 0.0
    %v318 = vld [vmem:[%s7] sm:$0xf]
    %v319 = vld [vmem:[%s7 + $0x4] sm:$0xf]
    %v320 = vld [vmem:[%s7 + $0x8] sm:$0xf]
    %v321 = vld [vmem:[%s7 + $0xc] sm:$0xf]
    %v322 = vld [vmem:[%s7 + $0x10] sm:$0xf]
    %v323 = vld [vmem:[%s7 + $0x14] sm:$0xf]
    %v324 = vld [vmem:[%s7 + $0x18] sm:$0xf]
    %v325 = vld [vmem:[%s7 + $0x1c] sm:$0xf]
    %v326 = vld [vmem:[%s7 + $0x20] sm:$0xf]
    %v327 = vld [vmem:[%s7 + $0x24] sm:$0xf]
    %v328 = vld [vmem:[%s7 + $0x28] sm:$0xf]
    %v329 = vld [vmem:[%s7 + $0x2c] sm:$0xf]
    %v330 = vld [vmem:[%s7 + $0x30] sm:$0xf]
    %v331 = vld [vmem:[%s7 + $0x34] sm:$0xf]
    %v332 = vld [vmem:[%s7 + $0x38] sm:$0xf]
    %v333 = vld [vmem:[%s7 + $0x3c] sm:$0xf]
    %v334 = vld [vmem:[%s8] sm:$0x1]
    %v336 = vlaneseq
    %v337 = vshrl.u32 %v336, 7
    %v338 = vsub.s32 0, %v337
    %v339 = vrot.slane %v334, %v338
    %v357 = vunpack.c.l.b16 %v318
    %v358 = vunpack.c.l.b16 %v319
    %v359 = vunpack.c.l.b16 %v320
    %v360 = vunpack.c.l.b16 %v321
    %v361 = vunpack.c.l.b16 %v322
    %v362 = vunpack.c.l.b16 %v323
    %v363 = vunpack.c.l.b16 %v324
    %v364 = vunpack.c.l.b16 %v325
    %v365 = vunpack.c.l.b16 %v326
    %v366 = vunpack.c.l.b16 %v327
    %v367 = vunpack.c.l.b16 %v328
    %v368 = vunpack.c.l.b16 %v329
    %v369 = vunpack.c.l.b16 %v330
    %v370 = vunpack.c.l.b16 %v331
    %v371 = vunpack.c.l.b16 %v332
    %v372 = vunpack.c.l.b16 %v333
    %v373 = vpack.c.b16 %v358, %v357
    %v374 = vpack.c.b16 %v360, %v359
    %v375 = vpack.c.b16 %v362, %v361
    %v376 = vpack.c.b16 %v364, %v363
    %v377 = vpack.c.b16 %v366, %v365
    %v378 = vpack.c.b16 %v368, %v367
    %v379 = vpack.c.b16 %v370, %v369
    %v380 = vpack.c.b16 %v372, %v371
    %389 = vmatprep.subr.bf16.mxu0 0
    %390 = vmatpush1.bf16.msra.mxu0 %v380
    %391 = vmatprep.subr.bf16.mxu0 0
    %392 = vmatpush1.bf16.msra.mxu0 %v379
    %393 = vmatprep.subr.bf16.mxu0 0
    %394 = vmatpush1.bf16.msra.mxu0 %v378
    %395 = vmatprep.subr.bf16.mxu0 0
    %396 = vmatpush1.bf16.msra.mxu0 %v377
    %397 = vmatprep.subr.bf16.mxu0 0
    %398 = vmatpush1.bf16.msra.mxu0 %v376
    %399 = vmatprep.subr.bf16.mxu0 0
    %400 = vmatpush1.bf16.msra.mxu0 %v375
    %401 = vmatprep.subr.bf16.mxu0 0
    %402 = vmatpush1.bf16.msra.mxu0 %v374
    %403 = vmatprep.subr.bf16.mxu0 0
    %404 = vmatpush1.bf16.msra.mxu0 %v373
    %405 = vmatprep.subr.bf16.mxu0 0
    %406 = vmatpush2.bf16.msra.mxu0 0
    %407 = vmatprep.subr.bf16.mxu0 0
    %408 = vmatpush2.bf16.msra.mxu0 0
    %409 = vmatprep.subr.bf16.mxu0 0
    %410 = vmatpush2.bf16.msra.mxu0 0
    %411 = vmatprep.subr.bf16.mxu0 0
    %412 = vmatpush2.bf16.msra.mxu0 0
    %413 = vmatprep.subr.bf16.mxu0 0
    %414 = vmatpush2.bf16.msra.mxu0 0
    %415 = vmatprep.subr.bf16.mxu0 0
    %416 = vmatpush2.bf16.msra.mxu0 0
    %417 = vmatprep.subr.bf16.mxu0 0
    %418 = vmatpush2.bf16.msra.mxu0 0
    %419 = vmatprep.subr.bf16.mxu0 0
    %420 = vmatpush2.bf16.msra.mxu0 0
    %421 = vmatprep.mubr.bf16.mxu0 0
    %422 = vmatmul.mubr.bf16.gmra.mxu0 %v205
    %v423 = vpop.f32.mrf.mxu0
    %v424 = vadd.f32 %v339, %v423
    %v425 = vpop.f32.mrf.mxu0
    %v426 = vpop.f32.mrf.mxu0
    %v427 = vpop.f32.mrf.mxu0
    %428 = vdwg.mxu0
    %v429 = vmax.f32 %v424, 0.0
    %v430 = vpack.c.bf16 %v317, %v317
    %v431 = vpack.c.bf16 %v429, %v429
    %v432 = vld [vmem:[%s9] sm:$0xf]
    %v433 = vld [vmem:[%s9 + $0x4] sm:$0xf]
    %v434 = vld [vmem:[%s9 + $0x8] sm:$0xf]
    %v435 = vld [vmem:[%s9 + $0xc] sm:$0xf]
    %v436 = vld [vmem:[%s9 + $0x10] sm:$0xf]
    %v437 = vld [vmem:[%s9 + $0x14] sm:$0xf]
    %v438 = vld [vmem:[%s9 + $0x18] sm:$0xf]
    %v439 = vld [vmem:[%s9 + $0x1c] sm:$0xf]
    %v440 = vld [vmem:[%s9 + $0x20] sm:$0xf]
    %v441 = vld [vmem:[%s9 + $0x24] sm:$0xf]
    %v442 = vld [vmem:[%s9 + $0x28] sm:$0xf]
    %v443 = vld [vmem:[%s9 + $0x2c] sm:$0xf]
    %v444 = vld [vmem:[%s9 + $0x30] sm:$0xf]
    %v445 = vld [vmem:[%s9 + $0x34] sm:$0xf]
    %v446 = vld [vmem:[%s9 + $0x38] sm:$0xf]
    %v447 = vld [vmem:[%s9 + $0x3c] sm:$0xf]
    %v448 = vld [vmem:[%s9 + $0x40] sm:$0xf]
    %v449 = vld [vmem:[%s9 + $0x44] sm:$0xf]
    %v450 = vld [vmem:[%s9 + $0x48] sm:$0xf]
    %v451 = vld [vmem:[%s9 + $0x4c] sm:$0xf]
    %v452 = vld [vmem:[%s9 + $0x50] sm:$0xf]
    %v453 = vld [vmem:[%s9 + $0x54] sm:$0xf]
    %v454 = vld [vmem:[%s9 + $0x58] sm:$0xf]
    %v455 = vld [vmem:[%s9 + $0x5c] sm:$0xf]
    %v456 = vld [vmem:[%s9 + $0x60] sm:$0xf]
    %v457 = vld [vmem:[%s9 + $0x64] sm:$0xf]
    %v458 = vld [vmem:[%s9 + $0x68] sm:$0xf]
    %v459 = vld [vmem:[%s9 + $0x6c] sm:$0xf]
    %v460 = vld [vmem:[%s9 + $0x70] sm:$0xf]
    %v461 = vld [vmem:[%s9 + $0x74] sm:$0xf]
    %v462 = vld [vmem:[%s9 + $0x78] sm:$0xf]
    %v463 = vld [vmem:[%s9 + $0x7c] sm:$0xf]
    %v464 = vld [vmem:[%s10] sm:$0x1]
    %v466 = vlaneseq
    %v467 = vshrl.u32 %v466, 7
    %v468 = vsub.s32 0, %v467
    %v469 = vrot.slane %v464, %v468
    %v503 = vunpack.c.l.b16 %v432
    %v504 = vunpack.c.l.b16 %v433
    %v505 = vunpack.c.l.b16 %v434
    %v506 = vunpack.c.l.b16 %v435
    %v507 = vunpack.c.l.b16 %v436
    %v508 = vunpack.c.l.b16 %v437
    %v509 = vunpack.c.l.b16 %v438
    %v510 = vunpack.c.l.b16 %v439
    %v511 = vunpack.c.l.b16 %v440
    %v512 = vunpack.c.l.b16 %v441
    %v513 = vunpack.c.l.b16 %v442
    %v514 = vunpack.c.l.b16 %v443
    %v515 = vunpack.c.l.b16 %v444
    %v516 = vunpack.c.l.b16 %v445
    %v517 = vunpack.c.l.b16 %v446
    %v518 = vunpack.c.l.b16 %v447
    %v519 = vunpack.c.l.b16 %v448
    %v520 = vunpack.c.l.b16 %v449
    %v521 = vunpack.c.l.b16 %v450
    %v522 = vunpack.c.l.b16 %v451
    %v523 = vunpack.c.l.b16 %v452
    %v524 = vunpack.c.l.b16 %v453
    %v525 = vunpack.c.l.b16 %v454
    %v526 = vunpack.c.l.b16 %v455
    %v527 = vunpack.c.l.b16 %v456
    %v528 = vunpack.c.l.b16 %v457
    %v529 = vunpack.c.l.b16 %v458
    %v530 = vunpack.c.l.b16 %v459
    %v531 = vunpack.c.l.b16 %v460
    %v532 = vunpack.c.l.b16 %v461
    %v533 = vunpack.c.l.b16 %v462
    %v534 = vunpack.c.l.b16 %v463
    %v535 = vpack.c.b16 %v504, %v503
    %v536 = vpack.c.b16 %v506, %v505
    %v537 = vpack.c.b16 %v508, %v507
    %v538 = vpack.c.b16 %v510, %v509
    %v539 = vpack.c.b16 %v512, %v511
    %v540 = vpack.c.b16 %v514, %v513
    %v541 = vpack.c.b16 %v516, %v515
    %v542 = vpack.c.b16 %v518, %v517
    %v543 = vpack.c.b16 %v520, %v519
    %v544 = vpack.c.b16 %v522, %v521
    %v545 = vpack.c.b16 %v524, %v523
    %v546 = vpack.c.b16 %v526, %v525
    %v547 = vpack.c.b16 %v528, %v527
    %v548 = vpack.c.b16 %v530, %v529
    %v549 = vpack.c.b16 %v532, %v531
    %v550 = vpack.c.b16 %v534, %v533
    %567 = vmatprep.subr.bf16.mxu0 0
    %568 = vmatpush1.bf16.msra.mxu0 %v542
    %569 = vmatprep.subr.bf16.mxu0 0
    %570 = vmatpush1.bf16.msra.mxu0 %v541
    %571 = vmatprep.subr.bf16.mxu0 0
    %572 = vmatpush1.bf16.msra.mxu0 %v540
    %573 = vmatprep.subr.bf16.mxu0 0
    %574 = vmatpush1.bf16.msra.mxu0 %v539
    %575 = vmatprep.subr.bf16.mxu0 0
    %576 = vmatpush1.bf16.msra.mxu0 %v538
    %577 = vmatprep.subr.bf16.mxu0 0
    %578 = vmatpush1.bf16.msra.mxu0 %v537
    %579 = vmatprep.subr.bf16.mxu0 0
    %580 = vmatpush1.bf16.msra.mxu0 %v536
    %581 = vmatprep.subr.bf16.mxu0 0
    %582 = vmatpush1.bf16.msra.mxu0 %v535
    %583 = vmatprep.subr.bf16.mxu0 0
    %584 = vmatpush2.bf16.msra.mxu0 %v550
    %585 = vmatprep.subr.bf16.mxu0 0
    %586 = vmatpush2.bf16.msra.mxu0 %v549
    %587 = vmatprep.subr.bf16.mxu0 0
    %588 = vmatpush2.bf16.msra.mxu0 %v548
    %589 = vmatprep.subr.bf16.mxu0 0
    %590 = vmatpush2.bf16.msra.mxu0 %v547
    %591 = vmatprep.subr.bf16.mxu0 0
    %592 = vmatpush2.bf16.msra.mxu0 %v546
    %593 = vmatprep.subr.bf16.mxu0 0
    %594 = vmatpush2.bf16.msra.mxu0 %v545
    %595 = vmatprep.subr.bf16.mxu0 0
    %596 = vmatpush2.bf16.msra.mxu0 %v544
    %597 = vmatprep.subr.bf16.mxu0 0
    %598 = vmatpush2.bf16.msra.mxu0 %v543
    %599 = vmatprep.mubr.bf16.mxu0 %v431
    %600 = vmatmul.mubr.bf16.gmra.mxu0 %v430
    %v601 = vpop.f32.mrf.mxu0
    %v602 = vadd.f32 %v469, %v601
    %v603 = vpop.f32.mrf.mxu0
    %v604 = vpop.f32.mrf.mxu0
    %v605 = vpop.f32.mrf.mxu0
    %606 = vdwg.mxu0
    %vm607 = vcmask 15360
    %608 = vst.msk [vmem:[%s11] sm:$0xff] %vm607, %v602
    // Predicated region
    $region50: #{tpu_custom_call.1} parent=1 // pred_check
      _
    $region51: #{tpu_custom_call.1} parent=1 // pred_check_branch
      %610 = sbr.rel (0) target = $region53
    $region52: #{tpu_custom_call.1} parent=1 // pred_region
      _
    $region53: #{tpu_custom_call.1} parent=1 // pred_fallthru
      _
    // Predicated region
    $region54: #{tpu_custom_call.1} parent=1 // pred_check
      _
    $region55: #{tpu_custom_call.1} parent=1 // pred_check_branch
      %612 = sbr.rel (0) target = $region57
    $region56: #{tpu_custom_call.1} parent=1 // pred_region
      _
    $region57: #{tpu_custom_call.1} parent=1 // pred_fallthru
      _
    %613 = vsyncpa [#allocation3], 1

</llo_original>
